<compile_context>
chip_gen: v6e
topology: v6e:2x2x1
jax: 0.10.0
libtpu: 0.0.40
codegen_flags: <defaults>
</compile_context>

<pallas_src>
import numpy as np
import jax
import jax.numpy as jnp
from jax import lax
from jax.experimental import pallas as pl
from jax.experimental.pallas import tpu as pltpu


def _vmem_spec():
    return pl.BlockSpec(memory_space=pltpu.MemorySpace.VMEM)


def _vmem_limit_bytes():
    # Re-derive the scoped-VMEM ceiling per TPU generation (v7x: 64 MiB
    # physical -> ~48 MiB; v5e/v6e: 128 MiB -> ~96 MiB).  Leave 1/4 headroom
    # for double-buffered IO.
    try:
        cap = pltpu.get_tpu_info().vmem_capacity_bytes
    except Exception:
        cap = 64 * 1024 * 1024
    return max(int(cap * 3 // 4), 32 * 1024 * 1024)


# --------------------------------------------------------------------------- #
# Pallas kernels
# --------------------------------------------------------------------------- #
def _make_fused_conv_kernel(taps1, taps2, m1, m2):
    """Fused Inception conv1 -> GELU -> Inception conv2 for one image.

    Activations are (flat-spatial, channels) slabs with fixed row stride, so
    every conv tap is a static sublane (row) shift; each conv is K*K small
    accumulating MXU matmuls with bf16 operands and f32 accumulation.  No
    im2col scratch, no packing stores.
    """
    inv_sqrt2 = np.float32(1.0 / np.sqrt(2.0))

    def kernel(x_ref, w1_ref, b1_ref, mask_ref, w2_ref, b2_ref, o_ref, mid_ref):
        # ---- conv1: per-tap accumulating matmuls on the bf16 input slab.
        h = None
        for i, t in enumerate(taps1):
            part = jnp.dot(x_ref[t:t + m1, :], w1_ref[i],
                           preferred_element_type=jnp.float32)
            h = part if h is None else h + part
        h = h + b1_ref[...]
        # exact (erf) GELU, matching torch.nn.GELU() default.
        # TODO(synk): tanh-approx GELU would use the EUP slot (cheaper on
        # v6e/v7x) at a small numerical difference vs the PyTorch reference.
        h = 0.5 * h * (1.0 + lax.erf(h * inv_sqrt2))
        # Mask rebuilds conv2's 'same' zero padding (conv1 on the padded grid
        # is not zero there) and zeroes the row-wrap garbage positions.
        mid_ref[...] = (h * mask_ref[...]).astype(mid_ref.dtype)   # bf16 VMEM
        # ---- conv2: per-tap accumulation on the VMEM-resident intermediate.
        acc = None
        for i, t in enumerate(taps2):
            part = jnp.dot(mid_ref[t:t + m2, :], w2_ref[i],
                           preferred_element_type=jnp.float32)
            acc = part if acc is None else acc + part
        o_ref[...] = (acc + b2_ref[...]).astype(o_ref.dtype)

    return kernel


def _make_combine_kernel(k):
    """out = x + sum_i softmax(period_weight)[:, i] * res_i (residual aliased)."""
    def kernel(*refs):
        pw_ref = refs[0]                       # (B, k, 1)
        res_refs = refs[1:1 + k]               # k x (B, T, N)
        x_ref = refs[1 + k]                    # (B, T, N)
        o_ref = refs[2 + k]                    # (B, T, N)
        pw = pw_ref[...].astype(jnp.float32)
        pw = pw - jnp.max(pw, axis=1, keepdims=True)
        e = jnp.exp(pw)
        denom = jnp.sum(e, axis=1, keepdims=True)
        w = e * pl.reciprocal(denom, approx=True)          # softmax over k (EUP)
        acc = x_ref[...].astype(jnp.float32)               # residual
        for i in range(k):                                 # k is tiny (2)
            acc = acc + res_refs[i][...].astype(jnp.float32) * w[:, i:i + 1, :]
        o_ref[...] = acc.astype(o_ref.dtype)
    return kernel


# --------------------------------------------------------------------------- #
# Pallas wrappers
# --------------------------------------------------------------------------- #
def inception_pair_pallas(x_blk, period, params):
    """Fused conv1 -> GELU -> conv2 on (B, length, N); length % period == 0."""
    B, length, N = x_blk.shape
    w1, b1, k1 = params["w1"], params["b1"], params["k1"]   # w1: (k1*k1, N, d_ff) bf16
    w2, b2, k2 = params["w2"], params["b2"], params["k2"]   # w2: (k2*k2, d_ff, d_model) bf16
    d_ff, d_model = w1.shape[2], w2.shape[2]
    H, W = length // period, period
    p1, p2 = (k1 - 1) // 2, (k2 - 1) // 2
    pt = p1 + p2
    Hq, Wq = H + 2 * pt, W + 2 * pt
    M2 = H * Wq                                   # flat output rows (stride Wq)
    M1 = (H + 2 * p2) * Wq + 2 * p2               # intermediate rows conv2 reads
    R = (Hq + 1) * Wq                             # one extra zero row >= tap overrun

    # channels-last flat layout with fixed row stride Wq: ONE fused pad (spatial
    # halo + one extra zero row) + bf16 cast, no transpose, single HBM read.
    img = x_blk.reshape(B, H, W, N)
    img = jnp.pad(img, ((0, 0), (pt, pt + 1), (pt, pt), (0, 0)))
    x_slab = img.reshape(B, R, N).astype(jnp.bfloat16)
    # TODO(synk): the pad could be hidden inside the kernel (memset VMEM slab +
    # strided DMA of the raw block) to make the activation a single exact read.

    # interior mask: flat positions that hold a real conv1 output; everything
    # else (conv2's 'same' halo + row-wrap positions) must be zero.
    mpos = np.arange(M1)
    rr, cc = mpos // Wq, mpos % Wq
    mask_np = (rr >= p2) & (rr < p2 + H) & (cc >= p2) & (cc < p2 + W)
    mask = jnp.asarray(mask_np.astype(np.float32)).reshape(M1, 1)

    taps1 = tuple(dh * Wq + dw for dh in range(k1) for dw in range(k1))
    taps2 = tuple(dh * Wq + dw for dh in range(k2) for dw in range(k2))

    out = pl.pallas_call(
        _make_fused_conv_kernel(taps1, taps2, M1, M2),
        out_shape=jax.ShapeDtypeStruct((B, M2, d_model), x_blk.dtype),
        grid=(B,),
        in_specs=[
            pl.BlockSpec((None, R, N), lambda b: (b, 0, 0)),              # bf16 slab
            pl.BlockSpec((k1 * k1, N, d_ff), lambda b: (0, 0, 0)),        # resident
            pl.BlockSpec((1, d_ff), lambda b: (0, 0)),                    # resident
            pl.BlockSpec((M1, 1), lambda b: (0, 0)),                      # resident
            pl.BlockSpec((k2 * k2, d_ff, d_model), lambda b: (0, 0, 0)),  # resident
            pl.BlockSpec((1, d_model), lambda b: (0, 0)),                 # resident
        ],
        out_specs=pl.BlockSpec((None, M2, d_model), lambda b: (b, 0, 0)),
        scratch_shapes=[
            pltpu.VMEM((M1, d_ff), jnp.bfloat16),      # GELU'd intermediate
        ],
        compiler_params=pltpu.CompilerParams(
            dimension_semantics=("parallel",),
            vmem_limit_bytes=_vmem_limit_bytes(),
        ),
    )(x_slab, w1, b1, mask, w2, b2)

    # (B, H*Wq, d_model) -> (B, length, d_model): drop pad / garbage columns.
    # Channels already last, so no transpose is needed.
    out = out.reshape(B, H, Wq, d_model)[:, :, :W, :]
    return out.reshape(B, length, d_model)


def combine_pallas(res_list, period_weight, x):
    """out = x + sum_i softmax(period_weight)[:, i] * res_i, residual aliased."""
    k = len(res_list)
    pw3 = period_weight.astype(jnp.float32)[:, :, None]     # (B, k, 1)
    out = pl.pallas_call(
        _make_combine_kernel(k),
        out_shape=jax.ShapeDtypeStruct(x.shape, x.dtype),
        in_specs=[_vmem_spec()] * (k + 2),
        out_specs=_vmem_spec(),
        input_output_aliases={k + 1: 0},     # x (un-reshaped) -> output buffer
    )(pw3, *res_list, x)
    return out


# --------------------------------------------------------------------------- #
# Parameter construction (deterministic, synthetic)
# --------------------------------------------------------------------------- #
def init_inception_block(key, cin, cout, num_kernels):
    """Inception_Block_V1: mean of num_kernels 'same' Conv2d (kernel 2i+1),
    folded into one 'same' conv of size kmax = 2*num_kernels-1 and stored in
    the kernel's per-tap matmul layout (kmax*kmax, cin, cout), bf16."""
    kmax = 2 * (num_kernels - 1) + 1
    w_eff = jnp.zeros((kmax, kmax, cin, cout), jnp.float32)
    b_eff = jnp.zeros((cout,), jnp.float32)
    for i in range(num_kernels):
        ks = 2 * i + 1
        key, kw, kb = jax.random.split(key, 3)
        fan_out = cout * ks * ks
        std = float(np.sqrt(2.0 / fan_out))      # kaiming_normal_(fan_out, relu)
        w = std * jax.random.normal(kw, (cout, cin, ks, ks), jnp.float32)
        b = 0.01 * jax.random.normal(kb, (cout,), jnp.float32)
        pad = (kmax - ks) // 2
        w_p = jnp.pad(w, ((0, 0), (0, 0), (pad, pad), (pad, pad)))
        w_eff = w_eff + jnp.transpose(w_p, (2, 3, 1, 0))   # -> (kh, kw, cin, cout)
        b_eff = b_eff + b
    w_eff = (w_eff / num_kernels).reshape(kmax * kmax, cin, cout)
    b_eff = (b_eff / num_kernels).reshape(1, cout)
    # bf16 MXU operands, f32 accumulation in the kernel (default-precision dot
    # truncates to bf16 on the MXU anyway; this just halves operand VMEM/BW).
    return w_eff.astype(jnp.bfloat16), b_eff, kmax


def init_timesblock_params(key, d_model, d_ff, num_kernels):
    k1, k2 = jax.random.split(key)
    w1, b1, K1 = init_inception_block(k1, d_model, d_ff, num_kernels)
    w2, b2, K2 = init_inception_block(k2, d_ff, d_model, num_kernels)
    return {"w1": w1, "b1": b1, "k1": K1, "w2": w2, "b2": b2, "k2": K2}


# --------------------------------------------------------------------------- #
# FFT_for_Period + TimesBlock forward (glue around the Pallas kernels)
# --------------------------------------------------------------------------- #
def fft_for_period(x, k=2):
    # TODO(synk): rfft / top-k period selection has no Pallas equivalent; done
    # in plain JAX with the top-k indices pulled to host (mirrors the
    # .detach().cpu().numpy() in the PyTorch reference and keeps per-period
    # conv shapes static).  This host sync is the remaining dispatch stall.
    xf = jnp.fft.rfft(x.astype(jnp.float32), axis=1)
    amp = jnp.abs(xf)                                   # (B, F, N)
    frequency_list = amp.mean(axis=0).mean(axis=-1)     # (F,)
    frequency_list = frequency_list.at[0].set(0.0)
    _, top = lax.top_k(frequency_list, k)
    top_list = np.asarray(jax.device_get(top))
    period = x.shape[1] // top_list
    period_weight = amp.mean(axis=-1)[:, top_list]      # (B, k)
    return period, period_weight


def times_block_forward(x, params, seq_len, pred_len, top_k):
    B, T, N = x.shape
    period_list, period_weight = fft_for_period(x, top_k)
    period_weight = period_weight.astype(x.dtype)
    total = seq_len + pred_len
    res = []
    for i in range(top_k):
        period = int(period_list[i])
        if total % period != 0:
            length = (total // period + 1) * period
            padding = jnp.zeros((B, length - total, N), x.dtype)
            out = jnp.concatenate([x, padding], axis=1)
        else:
            length = total
            out = x
        out = inception_pair_pallas(out, period, params)   # fused conv/GELU/conv
        res.append(out[:, :total, :].astype(x.dtype))
    # branches passed separately: no jnp.stack HBM round trip.
    return combine_pallas(res, period_weight, x)


# --------------------------------------------------------------------------- #
if __name__ == "__main__":
    # config: history_len=16, pred_len=0, d_model=8, d_ff=16, top_k=2, num_kernels=2
    B, T, N = 2, 16, 8
    D_FF = 16
    TOP_K = 2
    NUM_KERNELS = 2

    key = jax.random.PRNGKey(0)
    kx, kw = jax.random.split(key)
    x = jax.random.normal(kx, (B, T, N), dtype=jnp.float32)
    params = init_timesblock_params(kw, d_model=N, d_ff=D_FF,
                                    num_kernels=NUM_KERNELS)

    out = times_block_forward(x, params, seq_len=T, pred_len=0, top_k=TOP_K)
    out = jax.block_until_ready(out)
    assert out.shape == (B, T, N) and out.dtype == x.dtype
    print("KERNEL_OK")
</pallas_src>

<mosaic_0001>
module attributes {stable_mosaic.version = 11 : i64} {
  func.func @kernel(%arg0: i32, %arg1: memref<1x72x8xbf16, #tpu.memory_space<vmem>>, %arg2: memref<9x8x16xbf16, #tpu.memory_space<vmem>>, %arg3: memref<1x16xf32, #tpu.memory_space<vmem>>, %arg4: memref<50x1xf32, #tpu.memory_space<vmem>>, %arg5: memref<9x16x8xbf16, #tpu.memory_space<vmem>>, %arg6: memref<1x8xf32, #tpu.memory_space<vmem>>, %arg7: memref<1x32x8xf32, #tpu.memory_space<vmem>>, %arg8: memref<50x16xbf16, #tpu.memory_space<vmem>>) attributes {dimension_semantics = [#tpu.dimension_semantics<parallel>], iteration_bounds = array<i64: 2>, scalar_prefetch = 0 : i64, scratch_operands = 1 : i64, tpu.core_type = #tpu.core_type<tc>, window_params = [{transform_indices = @transform_0, window_bounds = array<i64: 1, 72, 8>}, {pipeline_mode = #tpu.pipeline_mode<synchronous>, transform_indices = @transform_1, window_bounds = array<i64: 9, 8, 16>}, {pipeline_mode = #tpu.pipeline_mode<synchronous>, transform_indices = @transform_2, window_bounds = array<i64: 1, 16>}, {pipeline_mode = #tpu.pipeline_mode<synchronous>, transform_indices = @transform_3, window_bounds = array<i64: 50, 1>}, {pipeline_mode = #tpu.pipeline_mode<synchronous>, transform_indices = @transform_4, window_bounds = array<i64: 9, 16, 8>}, {pipeline_mode = #tpu.pipeline_mode<synchronous>, transform_indices = @transform_5, window_bounds = array<i64: 1, 8>}, {transform_indices = @transform_6, window_bounds = array<i64: 1, 32, 8>}]} {
    %c0 = arith.constant 0 : index
    %c0_0 = arith.constant 0 : index
    %c0_1 = arith.constant 0 : index
    %0 = vector.load %arg1[%c0, %c0_0, %c0_1] : memref<1x72x8xbf16, #tpu.memory_space<vmem>>, vector<1x50x8xbf16>
    %1 = vector.shape_cast %0 : vector<1x50x8xbf16> to vector<50x8xbf16>
    %c0_2 = arith.constant 0 : index
    %c0_3 = arith.constant 0 : index
    %c0_4 = arith.constant 0 : index
    %2 = vector.load %arg2[%c0_2, %c0_3, %c0_4] : memref<9x8x16xbf16, #tpu.memory_space<vmem>>, vector<1x8x16xbf16>
    %3 = vector.shape_cast %2 : vector<1x8x16xbf16> to vector<8x16xbf16>
    %cst = arith.constant dense<0.000000e+00> : vector<50x16xf32>
    %4 = tpu.matmul %1, %3, %cst {dimension_numbers = #tpu.dot_dimension_numbers<[1], [0], [0], [1], [0, 0, 1, 1], [], []>} : vector<50x8xbf16>, vector<8x16xbf16>, vector<50x16xf32> -> vector<50x16xf32>
    %c0_5 = arith.constant 0 : index
    %c1 = arith.constant 1 : index
    %c0_6 = arith.constant 0 : index
    %5 = vector.load %arg1[%c0_5, %c1, %c0_6] : memref<1x72x8xbf16, #tpu.memory_space<vmem>>, vector<1x50x8xbf16>
    %6 = vector.shape_cast %5 : vector<1x50x8xbf16> to vector<50x8xbf16>
    %c1_7 = arith.constant 1 : index
    %c0_8 = arith.constant 0 : index
    %c0_9 = arith.constant 0 : index
    %7 = vector.load %arg2[%c1_7, %c0_8, %c0_9] : memref<9x8x16xbf16, #tpu.memory_space<vmem>>, vector<1x8x16xbf16>
    %8 = vector.shape_cast %7 : vector<1x8x16xbf16> to vector<8x16xbf16>
    %cst_10 = arith.constant dense<0.000000e+00> : vector<50x16xf32>
    %9 = tpu.matmul %6, %8, %cst_10 {dimension_numbers = #tpu.dot_dimension_numbers<[1], [0], [0], [1], [0, 0, 1, 1], [], []>} : vector<50x8xbf16>, vector<8x16xbf16>, vector<50x16xf32> -> vector<50x16xf32>
    %10 = arith.addf %4, %9 : vector<50x16xf32>
    %c0_11 = arith.constant 0 : index
    %c2 = arith.constant 2 : index
    %c0_12 = arith.constant 0 : index
    %11 = vector.load %arg1[%c0_11, %c2, %c0_12] : memref<1x72x8xbf16, #tpu.memory_space<vmem>>, vector<1x50x8xbf16>
    %12 = vector.shape_cast %11 : vector<1x50x8xbf16> to vector<50x8xbf16>
    %c2_13 = arith.constant 2 : index
    %c0_14 = arith.constant 0 : index
    %c0_15 = arith.constant 0 : index
    %13 = vector.load %arg2[%c2_13, %c0_14, %c0_15] : memref<9x8x16xbf16, #tpu.memory_space<vmem>>, vector<1x8x16xbf16>
    %14 = vector.shape_cast %13 : vector<1x8x16xbf16> to vector<8x16xbf16>
    %cst_16 = arith.constant dense<0.000000e+00> : vector<50x16xf32>
    %15 = tpu.matmul %12, %14, %cst_16 {dimension_numbers = #tpu.dot_dimension_numbers<[1], [0], [0], [1], [0, 0, 1, 1], [], []>} : vector<50x8xbf16>, vector<8x16xbf16>, vector<50x16xf32> -> vector<50x16xf32>
    %16 = arith.addf %10, %15 : vector<50x16xf32>
    %c0_17 = arith.constant 0 : index
    %c8 = arith.constant 8 : index
    %c0_18 = arith.constant 0 : index
    %17 = vector.load %arg1[%c0_17, %c8, %c0_18] : memref<1x72x8xbf16, #tpu.memory_space<vmem>>, vector<1x50x8xbf16>
    %18 = vector.shape_cast %17 : vector<1x50x8xbf16> to vector<50x8xbf16>
    %c3 = arith.constant 3 : index
    %c0_19 = arith.constant 0 : index
    %c0_20 = arith.constant 0 : index
    %19 = vector.load %arg2[%c3, %c0_19, %c0_20] : memref<9x8x16xbf16, #tpu.memory_space<vmem>>, vector<1x8x16xbf16>
    %20 = vector.shape_cast %19 : vector<1x8x16xbf16> to vector<8x16xbf16>
    %cst_21 = arith.constant dense<0.000000e+00> : vector<50x16xf32>
    %21 = tpu.matmul %18, %20, %cst_21 {dimension_numbers = #tpu.dot_dimension_numbers<[1], [0], [0], [1], [0, 0, 1, 1], [], []>} : vector<50x8xbf16>, vector<8x16xbf16>, vector<50x16xf32> -> vector<50x16xf32>
    %22 = arith.addf %16, %21 : vector<50x16xf32>
    %c0_22 = arith.constant 0 : index
    %c9 = arith.constant 9 : index
    %c0_23 = arith.constant 0 : index
    %23 = vector.load %arg1[%c0_22, %c9, %c0_23] : memref<1x72x8xbf16, #tpu.memory_space<vmem>>, vector<1x50x8xbf16>
    %24 = vector.shape_cast %23 : vector<1x50x8xbf16> to vector<50x8xbf16>
    %c4 = arith.constant 4 : index
    %c0_24 = arith.constant 0 : index
    %c0_25 = arith.constant 0 : index
    %25 = vector.load %arg2[%c4, %c0_24, %c0_25] : memref<9x8x16xbf16, #tpu.memory_space<vmem>>, vector<1x8x16xbf16>
    %26 = vector.shape_cast %25 : vector<1x8x16xbf16> to vector<8x16xbf16>
    %cst_26 = arith.constant dense<0.000000e+00> : vector<50x16xf32>
    %27 = tpu.matmul %24, %26, %cst_26 {dimension_numbers = #tpu.dot_dimension_numbers<[1], [0], [0], [1], [0, 0, 1, 1], [], []>} : vector<50x8xbf16>, vector<8x16xbf16>, vector<50x16xf32> -> vector<50x16xf32>
    %28 = arith.addf %22, %27 : vector<50x16xf32>
    %c0_27 = arith.constant 0 : index
    %c10 = arith.constant 10 : index
    %c0_28 = arith.constant 0 : index
    %29 = vector.load %arg1[%c0_27, %c10, %c0_28] : memref<1x72x8xbf16, #tpu.memory_space<vmem>>, vector<1x50x8xbf16>
    %30 = vector.shape_cast %29 : vector<1x50x8xbf16> to vector<50x8xbf16>
    %c5 = arith.constant 5 : index
    %c0_29 = arith.constant 0 : index
    %c0_30 = arith.constant 0 : index
    %31 = vector.load %arg2[%c5, %c0_29, %c0_30] : memref<9x8x16xbf16, #tpu.memory_space<vmem>>, vector<1x8x16xbf16>
    %32 = vector.shape_cast %31 : vector<1x8x16xbf16> to vector<8x16xbf16>
    %cst_31 = arith.constant dense<0.000000e+00> : vector<50x16xf32>
    %33 = tpu.matmul %30, %32, %cst_31 {dimension_numbers = #tpu.dot_dimension_numbers<[1], [0], [0], [1], [0, 0, 1, 1], [], []>} : vector<50x8xbf16>, vector<8x16xbf16>, vector<50x16xf32> -> vector<50x16xf32>
    %34 = arith.addf %28, %33 : vector<50x16xf32>
    %c0_32 = arith.constant 0 : index
    %c16 = arith.constant 16 : index
    %c0_33 = arith.constant 0 : index
    %35 = vector.load %arg1[%c0_32, %c16, %c0_33] : memref<1x72x8xbf16, #tpu.memory_space<vmem>>, vector<1x50x8xbf16>
    %36 = vector.shape_cast %35 : vector<1x50x8xbf16> to vector<50x8xbf16>
    %c6 = arith.constant 6 : index
    %c0_34 = arith.constant 0 : index
    %c0_35 = arith.constant 0 : index
    %37 = vector.load %arg2[%c6, %c0_34, %c0_35] : memref<9x8x16xbf16, #tpu.memory_space<vmem>>, vector<1x8x16xbf16>
    %38 = vector.shape_cast %37 : vector<1x8x16xbf16> to vector<8x16xbf16>
    %cst_36 = arith.constant dense<0.000000e+00> : vector<50x16xf32>
    %39 = tpu.matmul %36, %38, %cst_36 {dimension_numbers = #tpu.dot_dimension_numbers<[1], [0], [0], [1], [0, 0, 1, 1], [], []>} : vector<50x8xbf16>, vector<8x16xbf16>, vector<50x16xf32> -> vector<50x16xf32>
    %40 = arith.addf %34, %39 : vector<50x16xf32>
    %c0_37 = arith.constant 0 : index
    %c17 = arith.constant 17 : index
    %c0_38 = arith.constant 0 : index
    %41 = vector.load %arg1[%c0_37, %c17, %c0_38] : memref<1x72x8xbf16, #tpu.memory_space<vmem>>, vector<1x50x8xbf16>
    %42 = vector.shape_cast %41 : vector<1x50x8xbf16> to vector<50x8xbf16>
    %c7 = arith.constant 7 : index
    %c0_39 = arith.constant 0 : index
    %c0_40 = arith.constant 0 : index
    %43 = vector.load %arg2[%c7, %c0_39, %c0_40] : memref<9x8x16xbf16, #tpu.memory_space<vmem>>, vector<1x8x16xbf16>
    %44 = vector.shape_cast %43 : vector<1x8x16xbf16> to vector<8x16xbf16>
    %cst_41 = arith.constant dense<0.000000e+00> : vector<50x16xf32>
    %45 = tpu.matmul %42, %44, %cst_41 {dimension_numbers = #tpu.dot_dimension_numbers<[1], [0], [0], [1], [0, 0, 1, 1], [], []>} : vector<50x8xbf16>, vector<8x16xbf16>, vector<50x16xf32> -> vector<50x16xf32>
    %46 = arith.addf %40, %45 : vector<50x16xf32>
    %c0_42 = arith.constant 0 : index
    %c18 = arith.constant 18 : index
    %c0_43 = arith.constant 0 : index
    %47 = vector.load %arg1[%c0_42, %c18, %c0_43] : memref<1x72x8xbf16, #tpu.memory_space<vmem>>, vector<1x50x8xbf16>
    %48 = vector.shape_cast %47 : vector<1x50x8xbf16> to vector<50x8xbf16>
    %c8_44 = arith.constant 8 : index
    %c0_45 = arith.constant 0 : index
    %c0_46 = arith.constant 0 : index
    %49 = vector.load %arg2[%c8_44, %c0_45, %c0_46] : memref<9x8x16xbf16, #tpu.memory_space<vmem>>, vector<1x8x16xbf16>
    %50 = vector.shape_cast %49 : vector<1x8x16xbf16> to vector<8x16xbf16>
    %cst_47 = arith.constant dense<0.000000e+00> : vector<50x16xf32>
    %51 = tpu.matmul %48, %50, %cst_47 {dimension_numbers = #tpu.dot_dimension_numbers<[1], [0], [0], [1], [0, 0, 1, 1], [], []>} : vector<50x8xbf16>, vector<8x16xbf16>, vector<50x16xf32> -> vector<50x16xf32>
    %52 = arith.addf %46, %51 : vector<50x16xf32>
    %c0_48 = arith.constant 0 : index
    %c0_49 = arith.constant 0 : index
    %53 = vector.load %arg3[%c0_48, %c0_49] : memref<1x16xf32, #tpu.memory_space<vmem>>, vector<1x16xf32>
    %54 = vector.broadcast %53 : vector<1x16xf32> to vector<50x16xf32>
    %55 = arith.addf %52, %54 : vector<50x16xf32>
    %cst_50 = arith.constant 5.000000e-01 : f32
    %56 = vector.broadcast %cst_50 : f32 to vector<50x16xf32>
    %57 = arith.mulf %56, %55 : vector<50x16xf32>
    %cst_51 = arith.constant 0.707106769 : f32
    %58 = vector.broadcast %cst_51 : f32 to vector<50x16xf32>
    %59 = arith.mulf %55, %58 : vector<50x16xf32>
    %60 = math.erf %59 : vector<50x16xf32>
    %cst_52 = arith.constant 1.000000e+00 : f32
    %61 = vector.broadcast %cst_52 : f32 to vector<50x16xf32>
    %62 = arith.addf %61, %60 : vector<50x16xf32>
    %63 = arith.mulf %57, %62 : vector<50x16xf32>
    %c0_53 = arith.constant 0 : index
    %c0_54 = arith.constant 0 : index
    %64 = vector.load %arg4[%c0_53, %c0_54] : memref<50x1xf32, #tpu.memory_space<vmem>>, vector<50x1xf32>
    %65 = vector.broadcast %64 : vector<50x1xf32> to vector<50x16xf32>
    %66 = arith.mulf %63, %65 : vector<50x16xf32>
    %67 = arith.truncf %66 : vector<50x16xf32> to vector<50x16xbf16>
    %c0_55 = arith.constant 0 : index
    %c0_56 = arith.constant 0 : index
    %68 = vector.load %arg8[%c0_55, %c0_56] : memref<50x16xbf16, #tpu.memory_space<vmem>>, vector<50x16xbf16>
    tpu.vector_store %arg8[%c0_55, %c0_56], %67 {strides = array<i32>} : memref<50x16xbf16, #tpu.memory_space<vmem>>, vector<50x16xbf16>,
    %c0_57 = arith.constant 0 : index
    %c0_58 = arith.constant 0 : index
    %69 = vector.load %arg8[%c0_57, %c0_58] : memref<50x16xbf16, #tpu.memory_space<vmem>>, vector<32x16xbf16>
    %c0_59 = arith.constant 0 : index
    %c0_60 = arith.constant 0 : index
    %c0_61 = arith.constant 0 : index
    %70 = vector.load %arg5[%c0_59, %c0_60, %c0_61] : memref<9x16x8xbf16, #tpu.memory_space<vmem>>, vector<1x16x8xbf16>
    %71 = vector.shape_cast %70 : vector<1x16x8xbf16> to vector<16x8xbf16>
    %cst_62 = arith.constant dense<0.000000e+00> : vector<32x8xf32>
    %72 = tpu.matmul %69, %71, %cst_62 {dimension_numbers = #tpu.dot_dimension_numbers<[1], [0], [0], [1], [0, 0, 1, 1], [], []>} : vector<32x16xbf16>, vector<16x8xbf16>, vector<32x8xf32> -> vector<32x8xf32>
    %c1_63 = arith.constant 1 : index
    %c0_64 = arith.constant 0 : index
    %73 = vector.load %arg8[%c1_63, %c0_64] : memref<50x16xbf16, #tpu.memory_space<vmem>>, vector<32x16xbf16>
    %c1_65 = arith.constant 1 : index
    %c0_66 = arith.constant 0 : index
    %c0_67 = arith.constant 0 : index
    %74 = vector.load %arg5[%c1_65, %c0_66, %c0_67] : memref<9x16x8xbf16, #tpu.memory_space<vmem>>, vector<1x16x8xbf16>
    %75 = vector.shape_cast %74 : vector<1x16x8xbf16> to vector<16x8xbf16>
    %cst_68 = arith.constant dense<0.000000e+00> : vector<32x8xf32>
    %76 = tpu.matmul %73, %75, %cst_68 {dimension_numbers = #tpu.dot_dimension_numbers<[1], [0], [0], [1], [0, 0, 1, 1], [], []>} : vector<32x16xbf16>, vector<16x8xbf16>, vector<32x8xf32> -> vector<32x8xf32>
    %77 = arith.addf %72, %76 : vector<32x8xf32>
    %c2_69 = arith.constant 2 : index
    %c0_70 = arith.constant 0 : index
    %78 = vector.load %arg8[%c2_69, %c0_70] : memref<50x16xbf16, #tpu.memory_space<vmem>>, vector<32x16xbf16>
    %c2_71 = arith.constant 2 : index
    %c0_72 = arith.constant 0 : index
    %c0_73 = arith.constant 0 : index
    %79 = vector.load %arg5[%c2_71, %c0_72, %c0_73] : memref<9x16x8xbf16, #tpu.memory_space<vmem>>, vector<1x16x8xbf16>
    %80 = vector.shape_cast %79 : vector<1x16x8xbf16> to vector<16x8xbf16>
    %cst_74 = arith.constant dense<0.000000e+00> : vector<32x8xf32>
    %81 = tpu.matmul %78, %80, %cst_74 {dimension_numbers = #tpu.dot_dimension_numbers<[1], [0], [0], [1], [0, 0, 1, 1], [], []>} : vector<32x16xbf16>, vector<16x8xbf16>, vector<32x8xf32> -> vector<32x8xf32>
    %82 = arith.addf %77, %81 : vector<32x8xf32>
    %c8_75 = arith.constant 8 : index
    %c0_76 = arith.constant 0 : index
    %83 = vector.load %arg8[%c8_75, %c0_76] : memref<50x16xbf16, #tpu.memory_space<vmem>>, vector<32x16xbf16>
    %c3_77 = arith.constant 3 : index
    %c0_78 = arith.constant 0 : index
    %c0_79 = arith.constant 0 : index
    %84 = vector.load %arg5[%c3_77, %c0_78, %c0_79] : memref<9x16x8xbf16, #tpu.memory_space<vmem>>, vector<1x16x8xbf16>
    %85 = vector.shape_cast %84 : vector<1x16x8xbf16> to vector<16x8xbf16>
    %cst_80 = arith.constant dense<0.000000e+00> : vector<32x8xf32>
    %86 = tpu.matmul %83, %85, %cst_80 {dimension_numbers = #tpu.dot_dimension_numbers<[1], [0], [0], [1], [0, 0, 1, 1], [], []>} : vector<32x16xbf16>, vector<16x8xbf16>, vector<32x8xf32> -> vector<32x8xf32>
    %87 = arith.addf %82, %86 : vector<32x8xf32>
    %c9_81 = arith.constant 9 : index
    %c0_82 = arith.constant 0 : index
    %88 = vector.load %arg8[%c9_81, %c0_82] : memref<50x16xbf16, #tpu.memory_space<vmem>>, vector<32x16xbf16>
    %c4_83 = arith.constant 4 : index
    %c0_84 = arith.constant 0 : index
    %c0_85 = arith.constant 0 : index
    %89 = vector.load %arg5[%c4_83, %c0_84, %c0_85] : memref<9x16x8xbf16, #tpu.memory_space<vmem>>, vector<1x16x8xbf16>
    %90 = vector.shape_cast %89 : vector<1x16x8xbf16> to vector<16x8xbf16>
    %cst_86 = arith.constant dense<0.000000e+00> : vector<32x8xf32>
    %91 = tpu.matmul %88, %90, %cst_86 {dimension_numbers = #tpu.dot_dimension_numbers<[1], [0], [0], [1], [0, 0, 1, 1], [], []>} : vector<32x16xbf16>, vector<16x8xbf16>, vector<32x8xf32> -> vector<32x8xf32>
    %92 = arith.addf %87, %91 : vector<32x8xf32>
    %c10_87 = arith.constant 10 : index
    %c0_88 = arith.constant 0 : index
    %93 = vector.load %arg8[%c10_87, %c0_88] : memref<50x16xbf16, #tpu.memory_space<vmem>>, vector<32x16xbf16>
    %c5_89 = arith.constant 5 : index
    %c0_90 = arith.constant 0 : index
    %c0_91 = arith.constant 0 : index
    %94 = vector.load %arg5[%c5_89, %c0_90, %c0_91] : memref<9x16x8xbf16, #tpu.memory_space<vmem>>, vector<1x16x8xbf16>
    %95 = vector.shape_cast %94 : vector<1x16x8xbf16> to vector<16x8xbf16>
    %cst_92 = arith.constant dense<0.000000e+00> : vector<32x8xf32>
    %96 = tpu.matmul %93, %95, %cst_92 {dimension_numbers = #tpu.dot_dimension_numbers<[1], [0], [0], [1], [0, 0, 1, 1], [], []>} : vector<32x16xbf16>, vector<16x8xbf16>, vector<32x8xf32> -> vector<32x8xf32>
    %97 = arith.addf %92, %96 : vector<32x8xf32>
    %c16_93 = arith.constant 16 : index
    %c0_94 = arith.constant 0 : index
    %98 = vector.load %arg8[%c16_93, %c0_94] : memref<50x16xbf16, #tpu.memory_space<vmem>>, vector<32x16xbf16>
    %c6_95 = arith.constant 6 : index
    %c0_96 = arith.constant 0 : index
    %c0_97 = arith.constant 0 : index
    %99 = vector.load %arg5[%c6_95, %c0_96, %c0_97] : memref<9x16x8xbf16, #tpu.memory_space<vmem>>, vector<1x16x8xbf16>
    %100 = vector.shape_cast %99 : vector<1x16x8xbf16> to vector<16x8xbf16>
    %cst_98 = arith.constant dense<0.000000e+00> : vector<32x8xf32>
    %101 = tpu.matmul %98, %100, %cst_98 {dimension_numbers = #tpu.dot_dimension_numbers<[1], [0], [0], [1], [0, 0, 1, 1], [], []>} : vector<32x16xbf16>, vector<16x8xbf16>, vector<32x8xf32> -> vector<32x8xf32>
    %102 = arith.addf %97, %101 : vector<32x8xf32>
    %c17_99 = arith.constant 17 : index
    %c0_100 = arith.constant 0 : index
    %103 = vector.load %arg8[%c17_99, %c0_100] : memref<50x16xbf16, #tpu.memory_space<vmem>>, vector<32x16xbf16>
    %c7_101 = arith.constant 7 : index
    %c0_102 = arith.constant 0 : index
    %c0_103 = arith.constant 0 : index
    %104 = vector.load %arg5[%c7_101, %c0_102, %c0_103] : memref<9x16x8xbf16, #tpu.memory_space<vmem>>, vector<1x16x8xbf16>
    %105 = vector.shape_cast %104 : vector<1x16x8xbf16> to vector<16x8xbf16>
    %cst_104 = arith.constant dense<0.000000e+00> : vector<32x8xf32>
    %106 = tpu.matmul %103, %105, %cst_104 {dimension_numbers = #tpu.dot_dimension_numbers<[1], [0], [0], [1], [0, 0, 1, 1], [], []>} : vector<32x16xbf16>, vector<16x8xbf16>, vector<32x8xf32> -> vector<32x8xf32>
    %107 = arith.addf %102, %106 : vector<32x8xf32>
    %c18_105 = arith.constant 18 : index
    %c0_106 = arith.constant 0 : index
    %108 = vector.load %arg8[%c18_105, %c0_106] : memref<50x16xbf16, #tpu.memory_space<vmem>>, vector<32x16xbf16>
    %c8_107 = arith.constant 8 : index
    %c0_108 = arith.constant 0 : index
    %c0_109 = arith.constant 0 : index
    %109 = vector.load %arg5[%c8_107, %c0_108, %c0_109] : memref<9x16x8xbf16, #tpu.memory_space<vmem>>, vector<1x16x8xbf16>
    %110 = vector.shape_cast %109 : vector<1x16x8xbf16> to vector<16x8xbf16>
    %cst_110 = arith.constant dense<0.000000e+00> : vector<32x8xf32>
    %111 = tpu.matmul %108, %110, %cst_110 {dimension_numbers = #tpu.dot_dimension_numbers<[1], [0], [0], [1], [0, 0, 1, 1], [], []>} : vector<32x16xbf16>, vector<16x8xbf16>, vector<32x8xf32> -> vector<32x8xf32>
    %112 = arith.addf %107, %111 : vector<32x8xf32>
    %c0_111 = arith.constant 0 : index
    %c0_112 = arith.constant 0 : index
    %113 = vector.load %arg6[%c0_111, %c0_112] : memref<1x8xf32, #tpu.memory_space<vmem>>, vector<1x8xf32>
    %114 = vector.broadcast %113 : vector<1x8xf32> to vector<32x8xf32>
    %115 = arith.addf %112, %114 : vector<32x8xf32>
    %c0_113 = arith.constant 0 : index
    %c0_114 = arith.constant 0 : index
    %c0_115 = arith.constant 0 : index
    %116 = vector.load %arg7[%c0_113, %c0_114, %c0_115] : memref<1x32x8xf32, #tpu.memory_space<vmem>>, vector<1x32x8xf32>
    %117 = vector.shape_cast %116 : vector<1x32x8xf32> to vector<32x8xf32>
    %118 = vector.shape_cast %115 : vector<32x8xf32> to vector<1x32x8xf32>
    tpu.vector_store %arg7[%c0_113, %c0_114, %c0_115], %118 {strides = array<i32>} : memref<1x32x8xf32, #tpu.memory_space<vmem>>, vector<1x32x8xf32>,
    return
  }
  func.func @transform_0(%arg0: i32) -> (i32, i32, i32) {
    %c0_i32 = arith.constant 0 : i32
    %c0_i32_0 = arith.constant 0 : i32
    %c0_i32_1 = arith.constant 0 : i32
    return %arg0, %c0_i32, %c0_i32_0 : i32, i32, i32
  }
  func.func @transform_1(%arg0: i32) -> (i32, i32, i32) {
    %c0_i32 = arith.constant 0 : i32
    %c0_i32_0 = arith.constant 0 : i32
    %c0_i32_1 = arith.constant 0 : i32
    %c0_i32_2 = arith.constant 0 : i32
    return %c0_i32, %c0_i32_0, %c0_i32_1 : i32, i32, i32
  }
  func.func @transform_2(%arg0: i32) -> (i32, i32) {
    %c0_i32 = arith.constant 0 : i32
    %c0_i32_0 = arith.constant 0 : i32
    %c0_i32_1 = arith.constant 0 : i32
    return %c0_i32, %c0_i32_0 : i32, i32
  }
  func.func @transform_3(%arg0: i32) -> (i32, i32) {
    %c0_i32 = arith.constant 0 : i32
    %c0_i32_0 = arith.constant 0 : i32
    %c0_i32_1 = arith.constant 0 : i32
    return %c0_i32, %c0_i32_0 : i32, i32
  }
  func.func @transform_4(%arg0: i32) -> (i32, i32, i32) {
    %c0_i32 = arith.constant 0 : i32
    %c0_i32_0 = arith.constant 0 : i32
    %c0_i32_1 = arith.constant 0 : i32
    %c0_i32_2 = arith.constant 0 : i32
    return %c0_i32, %c0_i32_0, %c0_i32_1 : i32, i32, i32
  }
  func.func @transform_5(%arg0: i32) -> (i32, i32) {
    %c0_i32 = arith.constant 0 : i32
    %c0_i32_0 = arith.constant 0 : i32
    %c0_i32_1 = arith.constant 0 : i32
    return %c0_i32, %c0_i32_0 : i32, i32
  }
  func.func @transform_6(%arg0: i32) -> (i32, i32, i32) {
    %c0_i32 = arith.constant 0 : i32
    %c0_i32_0 = arith.constant 0 : i32
    %c0_i32_1 = arith.constant 0 : i32
    return %arg0, %c0_i32, %c0_i32_0 : i32, i32, i32
  }
}

</mosaic_0001>

<llo_original>
// kernel: tpu_custom_call.1
$region0: #{tpu_custom_call.1}
  #allocation0 [shape = 'u32[]', space=smem, size = 0x4, offset = 0x4, fixed_abs, tag = 'smem constant byte address 0x4 - core index']
  #allocation1 [shape = 'u32[144,128]{1,0:T(1,128)}', space=vmem, size = 0x12000, scoped, tag = 'internal scratch']
  #allocation2 [shape = 'bf16[50,16]{1,0:T(8,128)(2,1)}', space=vmem, size = 0x3800, scoped, tag = 'scratch operand']
  %s0 = inlined_call_operand.vmem [shape: bf16[2,72,8], index: 0, kind: input, shape index: {}]
  %s1 = inlined_call_operand.vmem [shape: bf16[9,8,16], index: 1, kind: input, shape index: {}]
  %s2 = inlined_call_operand.vmem [shape: f32[1,16], index: 2, kind: input, shape index: {}]
  %s3 = inlined_call_operand.vmem [shape: f32[50,1], index: 3, kind: input, shape index: {}]
  %s4 = inlined_call_operand.vmem [shape: bf16[9,16,8], index: 4, kind: input, shape index: {}]
  %s5 = inlined_call_operand.vmem [shape: f32[1,8], index: 5, kind: input, shape index: {}]
  %s6 = inlined_call_operand.vmem [shape: f32[2,32,8], index: 6, kind: output, shape index: {}]
  %s7 = sld [smem:[#allocation0]]
  $region57: #{tpu_custom_call.1} parent=0
    _
  %s9 = ssub.s32 1, %s7
  %s10 = scalar_select 0, %s9, %s7
  loop: start=0, step=1, limit=4
  $region2: #{tpu_custom_call.1} parent=0 // loop_pre_header
    _
  $region3: #{tpu_custom_call.1} parent=0 // loop_header
    %s12 = sphi 0, %s16
    %p13 = scmp.ge.s32.totalorder %s12, 4
    %s22 = sphi 0, %s24
    %s25 = sphi 0, %s22
    %s26 = sphi 0, %s25
    %s42 = sphi 0, %s26
    %s46 = sphi 0, %s46
    %s48 = sphi 0, %s46
    %s49 = sphi 0, %s48
    %s63 = sphi 0, %s49
    %s67 = sphi 0, %s67
    %s69 = sphi 0, %s67
    %s70 = sphi 0, %s69
    %s84 = sphi 0, %s70
    %s88 = sphi 0, %s88
    %s90 = sphi 0, %s88
    %s91 = sphi 0, %s90
    %s105 = sphi 0, %s91
    %s109 = sphi 0, %s109
    %s111 = sphi 0, %s109
    %s112 = sphi 0, %s111
    %s126 = sphi 0, %s112
    %s130 = sphi 0, %s130
    %s132 = sphi 0, %s130
    %s133 = sphi 0, %s132
    %s147 = sphi 0, %s133
    %s153 = sphi 0, %s155
    %s156 = sphi 0, %s153
    %s157 = sphi 0, %s156
    %s173 = sphi 0, %s157
  $region4: #{tpu_custom_call.1} parent=0 // loop_header_branch
    %15 = sbr.rel (%p13) target = $region8
  $region5: #{tpu_custom_call.1} parent=0 // loop_body
    %s17 = ssub.s32 %s12, 1
    %s18 = ssub.s32 %s12, 2
    %s19 = sadd.s32 %s12, 1
    %s20 = ssub.s32 %s12, %s19
    %p21 = scmp.eq.s32.totalorder %s20, 0
    %s23 = sadd.s32 %s22, 1
    %s24 = scalar_select %p21, %s22, %s23
    %p27 = pneg %p21
    %p28 = scmp.eq.s32.totalorder %s12, 1
    %p29 = por %p27, %p28
    %p30 = scmp.ne.s32.totalorder %s22, %s25
    %p31 = scmp.eq.s32.totalorder %s12, 0
    %p32 = por %p30, %p31
    %p33 = scmp.ne.s32.totalorder %s22, %s25
    %p34 = scmp.eq.s32.totalorder %s17, 1
    %p35 = por %p33, %p34
    %p36 = scmp.ne.s32.totalorder %s25, %s26
    %p37 = scmp.eq.s32.totalorder %s17, 0
    %p38 = por %p36, %p37
    %p39 = scmp.ne.s32.totalorder %s25, %s26
    %p40 = scmp.eq.s32.totalorder %s18, 1
    %p41 = por %p39, %p40
    %p43 = scmp.ne.s32.totalorder %s26, %s42
    %p44 = scmp.eq.s32.totalorder %s18, 0
    %p45 = por %p43, %p44
    %s47 = sadd.s32 %s46, 1
    %p50 = scmp.eq.s32.totalorder %s12, 1
    %p51 = scmp.ne.s32.totalorder %s46, %s48
    %p52 = scmp.eq.s32.totalorder %s12, 0
    %p53 = por %p51, %p52
    %p54 = scmp.ne.s32.totalorder %s46, %s48
    %p55 = scmp.eq.s32.totalorder %s17, 1
    %p56 = por %p54, %p55
    %p57 = scmp.ne.s32.totalorder %s48, %s49
    %p58 = scmp.eq.s32.totalorder %s17, 0
    %p59 = por %p57, %p58
    %p60 = scmp.ne.s32.totalorder %s48, %s49
    %p61 = scmp.eq.s32.totalorder %s18, 1
    %p62 = por %p60, %p61
    %p64 = scmp.ne.s32.totalorder %s49, %s63
    %p65 = scmp.eq.s32.totalorder %s18, 0
    %p66 = por %p64, %p65
    %s68 = sadd.s32 %s67, 1
    %p71 = scmp.eq.s32.totalorder %s12, 1
    %p72 = scmp.ne.s32.totalorder %s67, %s69
    %p73 = scmp.eq.s32.totalorder %s12, 0
    %p74 = por %p72, %p73
    %p75 = scmp.ne.s32.totalorder %s67, %s69
    %p76 = scmp.eq.s32.totalorder %s17, 1
    %p77 = por %p75, %p76
    %p78 = scmp.ne.s32.totalorder %s69, %s70
    %p79 = scmp.eq.s32.totalorder %s17, 0
    %p80 = por %p78, %p79
    %p81 = scmp.ne.s32.totalorder %s69, %s70
    %p82 = scmp.eq.s32.totalorder %s18, 1
    %p83 = por %p81, %p82
    %p85 = scmp.ne.s32.totalorder %s70, %s84
    %p86 = scmp.eq.s32.totalorder %s18, 0
    %p87 = por %p85, %p86
    %s89 = sadd.s32 %s88, 1
    %p92 = scmp.eq.s32.totalorder %s12, 1
    %p93 = scmp.ne.s32.totalorder %s88, %s90
    %p94 = scmp.eq.s32.totalorder %s12, 0
    %p95 = por %p93, %p94
    %p96 = scmp.ne.s32.totalorder %s88, %s90
    %p97 = scmp.eq.s32.totalorder %s17, 1
    %p98 = por %p96, %p97
    %p99 = scmp.ne.s32.totalorder %s90, %s91
    %p100 = scmp.eq.s32.totalorder %s17, 0
    %p101 = por %p99, %p100
    %p102 = scmp.ne.s32.totalorder %s90, %s91
    %p103 = scmp.eq.s32.totalorder %s18, 1
    %p104 = por %p102, %p103
    %p106 = scmp.ne.s32.totalorder %s91, %s105
    %p107 = scmp.eq.s32.totalorder %s18, 0
    %p108 = por %p106, %p107
    %s110 = sadd.s32 %s109, 1
    %p113 = scmp.eq.s32.totalorder %s12, 1
    %p114 = scmp.ne.s32.totalorder %s109, %s111
    %p115 = scmp.eq.s32.totalorder %s12, 0
    %p116 = por %p114, %p115
    %p117 = scmp.ne.s32.totalorder %s109, %s111
    %p118 = scmp.eq.s32.totalorder %s17, 1
    %p119 = por %p117, %p118
    %p120 = scmp.ne.s32.totalorder %s111, %s112
    %p121 = scmp.eq.s32.totalorder %s17, 0
    %p122 = por %p120, %p121
    %p123 = scmp.ne.s32.totalorder %s111, %s112
    %p124 = scmp.eq.s32.totalorder %s18, 1
    %p125 = por %p123, %p124
    %p127 = scmp.ne.s32.totalorder %s112, %s126
    %p128 = scmp.eq.s32.totalorder %s18, 0
    %p129 = por %p127, %p128
    %s131 = sadd.s32 %s130, 1
    %p134 = scmp.eq.s32.totalorder %s12, 1
    %p135 = scmp.ne.s32.totalorder %s130, %s132
    %p136 = scmp.eq.s32.totalorder %s12, 0
    %p137 = por %p135, %p136
    %p138 = scmp.ne.s32.totalorder %s130, %s132
    %p139 = scmp.eq.s32.totalorder %s17, 1
    %p140 = por %p138, %p139
    %p141 = scmp.ne.s32.totalorder %s132, %s133
    %p142 = scmp.eq.s32.totalorder %s17, 0
    %p143 = por %p141, %p142
    %p144 = scmp.ne.s32.totalorder %s132, %s133
    %p145 = scmp.eq.s32.totalorder %s18, 1
    %p146 = por %p144, %p145
    %p148 = scmp.ne.s32.totalorder %s133, %s147
    %p149 = scmp.eq.s32.totalorder %s18, 0
    %p150 = por %p148, %p149
    %s151 = ssub.s32 %s12, %s19
    %p152 = scmp.eq.s32.totalorder %s151, 0
    %s154 = sadd.s32 %s153, 1
    %s155 = scalar_select %p152, %s153, %s154
    %p158 = pneg %p152
    %p159 = scmp.eq.s32.totalorder %s12, 1
    %p160 = por %p158, %p159
    %p161 = scmp.ne.s32.totalorder %s153, %s156
    %p162 = scmp.eq.s32.totalorder %s12, 0
    %p163 = por %p161, %p162
    %p164 = scmp.ne.s32.totalorder %s153, %s156
    %p165 = scmp.eq.s32.totalorder %s17, 1
    %p166 = por %p164, %p165
    %p167 = scmp.ne.s32.totalorder %s156, %s157
    %p168 = scmp.eq.s32.totalorder %s17, 0
    %p169 = por %p167, %p168
    %p170 = scmp.ne.s32.totalorder %s156, %s157
    %p171 = scmp.eq.s32.totalorder %s18, 1
    %p172 = por %p170, %p171
    %p174 = scmp.ne.s32.totalorder %s157, %s173
    %p175 = scmp.eq.s32.totalorder %s18, 0
    %p176 = por %p174, %p175
    %p177 = scmp.le.s32.totalorder 1, %s12
    %p178 = scmp.lt.s32.totalorder %s12, 3
    %p179 = pnand %p177, %p178
    %p180 = pneg %p179
    // Predicated region
    $region9: #{tpu_custom_call.1} parent=5 // pred_check
      _
    $region10: #{tpu_custom_call.1} parent=5 // pred_check_branch
      %182 = sbr.rel (%p179) target = $region12
    $region11: #{tpu_custom_call.1} parent=5 // pred_region
      %s183 = ssub.s32 %s12, 1
      // Predicated region
      $region13: #{tpu_custom_call.1} parent=11 // pred_check
        %p184 = pneg %p59
      $region14: #{tpu_custom_call.1} parent=11 // pred_check_branch
        %186 = sbr.rel (%p184) target = $region16
      $region15: #{tpu_custom_call.1} parent=11 // pred_region
        _
      $region16: #{tpu_custom_call.1} parent=11 // pred_fallthru
        _
      // Predicated region
      $region17: #{tpu_custom_call.1} parent=11 // pred_check
        %p187 = pneg %p80
      $region18: #{tpu_custom_call.1} parent=11 // pred_check_branch
        %189 = sbr.rel (%p187) target = $region20
      $region19: #{tpu_custom_call.1} parent=11 // pred_region
        _
      $region20: #{tpu_custom_call.1} parent=11 // pred_fallthru
        _
      // Predicated region
      $region21: #{tpu_custom_call.1} parent=11 // pred_check
        %p190 = pneg %p101
      $region22: #{tpu_custom_call.1} parent=11 // pred_check_branch
        %192 = sbr.rel (%p190) target = $region24
      $region23: #{tpu_custom_call.1} parent=11 // pred_region
        _
      $region24: #{tpu_custom_call.1} parent=11 // pred_fallthru
        _
      // Predicated region
      $region25: #{tpu_custom_call.1} parent=11 // pred_check
        %p193 = pneg %p122
      $region26: #{tpu_custom_call.1} parent=11 // pred_check_branch
        %195 = sbr.rel (%p193) target = $region28
      $region27: #{tpu_custom_call.1} parent=11 // pred_region
        _
      $region28: #{tpu_custom_call.1} parent=11 // pred_fallthru
        _
      // Predicated region
      $region29: #{tpu_custom_call.1} parent=11 // pred_check
        %p196 = pneg %p143
      $region30: #{tpu_custom_call.1} parent=11 // pred_check_branch
        %198 = sbr.rel (%p196) target = $region32
      $region31: #{tpu_custom_call.1} parent=11 // pred_region
        _
      $region32: #{tpu_custom_call.1} parent=11 // pred_fallthru
        _
    $region12: #{tpu_custom_call.1} parent=5 // pred_fallthru
      _
    %p199 = scmp.lt.s32.totalorder %s12, 2
    // Predicated region
    $region33: #{tpu_custom_call.1} parent=5 // pred_check
      %p200 = pneg %p199
    $region34: #{tpu_custom_call.1} parent=5 // pred_check_branch
      %202 = sbr.rel (%p200) target = $region36
    $region35: #{tpu_custom_call.1} parent=5 // pred_region
      // Predicated region
      $region37: #{tpu_custom_call.1} parent=35 // pred_check
        %p203 = pneg %p32
      $region38: #{tpu_custom_call.1} parent=35 // pred_check_branch
        %205 = sbr.rel (%p203) target = $region40
      $region39: #{tpu_custom_call.1} parent=35 // pred_region
        %p206 = scmp.lt.s32.totalorder %s12, 1
        %s207 = scalar_select %p206, %s12, 1
        %s208 = smul.addr %s207, 9
        %s209 = smul.addr %s208, 4
        %s210 = scalar_lea.vmem %s0, %s209
      $region40: #{tpu_custom_call.1} parent=35 // pred_fallthru
        _
    $region36: #{tpu_custom_call.1} parent=5 // pred_fallthru
      _
    %p211 = scmp.le.s32.totalorder 1, %s12
    %p212 = scmp.lt.s32.totalorder %s12, 3
    %p213 = pnand %p211, %p212
    %p214 = pneg %p213
    // Predicated region
    $region41: #{tpu_custom_call.1} parent=5 // pred_check
      _
    $region42: #{tpu_custom_call.1} parent=5 // pred_check_branch
      %216 = sbr.rel (%p213) target = $region44
    $region43: #{tpu_custom_call.1} parent=5 // pred_region
      %s217 = ssub.s32 %s12, 1
      %p218 = scmp.lt.s32.totalorder %s17, 1
      %s219 = scalar_select %p218, %s17, 1
      %s220 = smul.addr %s219, 9
      %s221 = smul.addr %s220, 4
      %s222 = scalar_lea.vmem %s0, %s221
      %p223 = pneg %p38
      %p224 = pneg %p35
      %p225 = pneg %p59
      %p226 = pneg %p56
      %p227 = pneg %p80
      %p228 = pneg %p77
      %p229 = pneg %p101
      %p230 = pneg %p98
      %p231 = pneg %p122
      %p232 = pneg %p119
      %p233 = pneg %p143
      %p234 = pneg %p140
      %p235 = pneg %p169
      %p236 = pneg %p166
      %p237 = scmp.lt.s32.totalorder %s17, 1
      %s238 = scalar_select %p237, %s17, 1
      %s239 = smul.addr %s238, 4
      %s240 = smul.addr %s239, 8
      %s241 = scalar_lea.vmem %s6, %s240
      %p242 = scmp.lt.s32.totalorder %s17, 1
      %s243 = scalar_select %p242, %s17, 1
      %s244 = smul.addr %s243, 9
      %s245 = smul.addr %s244, 4
      %s246 = scalar_lea.vmem %s0, %s245
      %p247 = scmp.lt.s32.totalorder %s17, 1
      %s248 = scalar_select %p247, %s17, 1
      %s249 = smul.addr %s248, 4
      %s250 = smul.addr %s249, 8
      %s251 = scalar_lea.vmem %s6, %s250
      %v253 = vld [vmem:[%s246] sm:$0xf]
      %v254 = vld [vmem:[%s246 + $0x4] sm:$0xf]
      %v255 = vld [vmem:[%s246 + $0x8] sm:$0xf]
      %v256 = vld [vmem:[%s246 + $0xc] sm:$0xf]
      %v257 = vld [vmem:[%s246 + $0x10] sm:$0xf]
      %v258 = vld [vmem:[%s246 + $0x14] sm:$0xf]
      %v259 = vld [vmem:[%s246 + $0x18] sm:$0x1]
      %v260 = vld [vmem:[%s1] sm:$0xf]
      %v261 = vld [vmem:[%s246 + $0x18] sm:$0x3]
      %s262 = scalar_lea.vmem %s1, 4
      %v263 = vld [vmem:[%s262] sm:$0xf]
      %v271 = vunpack.c.l.b16 %v253
      %v272 = vunpack.c.l.b16 %v254
      %v273 = vunpack.c.l.b16 %v255
      %v274 = vunpack.c.l.b16 %v256
      %v275 = vunpack.c.l.b16 %v257
      %v276 = vunpack.c.l.b16 %v258
      %v277 = vunpack.c.l.b16 %v261
      %v278 = vpack.c.b16 %v272, %v271
      %v279 = vpack.c.b16 %v274, %v273
      %v280 = vpack.c.b16 %v276, %v275
      %v281 = vpack.c.b16 %v277, %v277
      %vm282 = vsmask.f32 7424
      %v284 = vshrl.u32 %v278, 16
      %v286 = vshll.u32 %v278, 16
      %v288 = vrot.slane %v286, 1
      %v289 = vor.u32 %v284, %v288
      %v291 = vshll.u32 %v279, 16
      %v293 = vrot.slane %v291, 1
      %v294 = vsel %vm282, %v289, %v293
      %v295 = vshrl.u32 %v279, 16
      %v297 = vor.u32 %v295, %v293
      %v299 = vshll.u32 %v280, 16
      %v301 = vrot.slane %v299, 1
      %v302 = vsel %vm282, %v297, %v301
      %v303 = vshrl.u32 %v280, 16
      %v305 = vor.u32 %v303, %v301
      %v307 = vshll.u32 %v281, 16
      %v309 = vrot.slane %v307, 1
      %v310 = vsel %vm282, %v305, %v309
      %v311 = vshrl.u32 %v281, 16
      %v313 = vor.u32 %v311, %v309
      %vm314 = vcmask 64512
      %v316 = vsel %vm314, %v294, 0
      %v319 = vsel %vm314, %v302, 0
      %v322 = vsel %vm314, %v310, 0
      %v325 = vsel %vm314, %v313, 0
      %vm327 = vcmask 1043456
      %v329 = vsel %vm327, %v263, 0
      %331 = vmatprep.subr.bf16.mxu0 0
      %332 = vmatpush1.bf16.msra.mxu0 0
      %333 = vmatprep.subr.bf16.mxu0 0
      %334 = vmatpush1.bf16.msra.mxu0 0
      %335 = vmatprep.subr.bf16.mxu0 0
      %336 = vmatpush1.bf16.msra.mxu0 0
      %337 = vmatprep.subr.bf16.mxu0 0
      %338 = vmatpush1.bf16.msra.mxu0 0
      %339 = vmatprep.subr.bf16.mxu0 0
      %340 = vmatpush1.bf16.msra.mxu0 0
      %341 = vmatprep.subr.bf16.mxu0 0
      %342 = vmatpush1.bf16.msra.mxu0 0
      %343 = vmatprep.subr.bf16.mxu0 0
      %344 = vmatpush1.bf16.msra.mxu0 0
      %345 = vmatprep.subr.bf16.mxu0 0
      %346 = vmatpush1.bf16.msra.mxu0 %v329
      %347 = vmatprep.subr.bf16.mxu0 0
      %348 = vmatpush2.bf16.msra.mxu0 0
      %349 = vmatprep.subr.bf16.mxu0 0
      %350 = vmatpush2.bf16.msra.mxu0 0
      %351 = vmatprep.subr.bf16.mxu0 0
      %352 = vmatpush2.bf16.msra.mxu0 0
      %353 = vmatprep.subr.bf16.mxu0 0
      %354 = vmatpush2.bf16.msra.mxu0 0
      %355 = vmatprep.subr.bf16.mxu0 0
      %356 = vmatpush2.bf16.msra.mxu0 0
      %357 = vmatprep.subr.bf16.mxu0 0
      %358 = vmatpush2.bf16.msra.mxu0 0
      %359 = vmatprep.subr.bf16.mxu0 0
      %360 = vmatpush2.bf16.msra.mxu0 0
      %361 = vmatprep.subr.bf16.mxu0 0
      %362 = vmatpush2.bf16.msra.mxu0 0
      %363 = vmatprep.mubr.bf16.mxu0 0
      %364 = vmatmul.mubr.bf16.gmra.mxu0 %v316
      %v365 = vpop.f32.mrf.mxu0
      %v366 = vadd.f32 0.0, %v365
      %v367 = vpop.f32.mrf.mxu0
      %v368 = vpop.f32.mrf.mxu0
      %v369 = vadd.f32 0.0, %v368
      %v370 = vpop.f32.mrf.mxu0
      %371 = vmatprep.mubr.bf16.mxu0 0
      %372 = vmatmul.mubr.bf16.gmra.mxu0 %v319
      %v373 = vpop.f32.mrf.mxu0
      %v374 = vadd.f32 0.0, %v373
      %v375 = vpop.f32.mrf.mxu0
      %v376 = vpop.f32.mrf.mxu0
      %v377 = vadd.f32 0.0, %v376
      %v378 = vpop.f32.mrf.mxu0
      %379 = vmatprep.mubr.bf16.mxu0 0
      %380 = vmatmul.mubr.bf16.gmra.mxu0 %v322
      %v381 = vpop.f32.mrf.mxu0
      %v382 = vadd.f32 0.0, %v381
      %v383 = vpop.f32.mrf.mxu0
      %v384 = vpop.f32.mrf.mxu0
      %v385 = vadd.f32 0.0, %v384
      %v386 = vpop.f32.mrf.mxu0
      %387 = vmatprep.mubr.bf16.mxu0 0
      %388 = vmatmul.mubr.bf16.gmra.mxu0 %v325
      %v389 = vpop.f32.mrf.mxu0
      %v390 = vadd.f32 0.0, %v389
      %v391 = vpop.f32.mrf.mxu0
      %v392 = vpop.f32.mrf.mxu0
      %v393 = vpop.f32.mrf.mxu0
      %394 = vdwg.mxu0
      %v396 = vunpack.c.l.b16 %v259
      %v397 = vpack.c.b16 %v396, %v396
      %v398 = vsel %vm314, %v278, 0
      %v400 = vsel %vm314, %v279, 0
      %v402 = vsel %vm314, %v280, 0
      %v405 = vsel %vm314, %v397, 0
      %v408 = vsel %vm327, %v260, 0
      %410 = vmatprep.subr.bf16.mxu0 0
      %411 = vmatpush1.bf16.msra.mxu0 0
      %412 = vmatprep.subr.bf16.mxu0 0
      %413 = vmatpush1.bf16.msra.mxu0 0
      %414 = vmatprep.subr.bf16.mxu0 0
      %415 = vmatpush1.bf16.msra.mxu0 0
      %416 = vmatprep.subr.bf16.mxu0 0
      %417 = vmatpush1.bf16.msra.mxu0 0
      %418 = vmatprep.subr.bf16.mxu0 0
      %419 = vmatpush1.bf16.msra.mxu0 0
      %420 = vmatprep.subr.bf16.mxu0 0
      %421 = vmatpush1.bf16.msra.mxu0 0
      %422 = vmatprep.subr.bf16.mxu0 0
      %423 = vmatpush1.bf16.msra.mxu0 0
      %424 = vmatprep.subr.bf16.mxu0 0
      %425 = vmatpush1.bf16.msra.mxu0 %v408
      %426 = vmatprep.subr.bf16.mxu0 0
      %427 = vmatpush2.bf16.msra.mxu0 0
      %428 = vmatprep.subr.bf16.mxu0 0
      %429 = vmatpush2.bf16.msra.mxu0 0
      %430 = vmatprep.subr.bf16.mxu0 0
      %431 = vmatpush2.bf16.msra.mxu0 0
      %432 = vmatprep.subr.bf16.mxu0 0
      %433 = vmatpush2.bf16.msra.mxu0 0
      %434 = vmatprep.subr.bf16.mxu0 0
      %435 = vmatpush2.bf16.msra.mxu0 0
      %436 = vmatprep.subr.bf16.mxu0 0
      %437 = vmatpush2.bf16.msra.mxu0 0
      %438 = vmatprep.subr.bf16.mxu0 0
      %439 = vmatpush2.bf16.msra.mxu0 0
      %440 = vmatprep.subr.bf16.mxu0 0
      %441 = vmatpush2.bf16.msra.mxu0 0
      %442 = vmatprep.mubr.bf16.mxu0 0
      %443 = vmatmul.mubr.bf16.gmra.mxu0 %v398
      %v444 = vpop.f32.mrf.mxu0
      %v445 = vadd.f32 %v366, %v444
      %v446 = vpop.f32.mrf.mxu0
      %v447 = vpop.f32.mrf.mxu0
      %v448 = vadd.f32 %v369, %v447
      %v449 = vpop.f32.mrf.mxu0
      %450 = vmatprep.mubr.bf16.mxu0 0
      %451 = vmatmul.mubr.bf16.gmra.mxu0 %v400
      %v452 = vpop.f32.mrf.mxu0
      %v453 = vadd.f32 %v374, %v452
      %v454 = vpop.f32.mrf.mxu0
      %v455 = vpop.f32.mrf.mxu0
      %v456 = vadd.f32 %v377, %v455
      %v457 = vpop.f32.mrf.mxu0
      %458 = vmatprep.mubr.bf16.mxu0 0
      %459 = vmatmul.mubr.bf16.gmra.mxu0 %v402
      %v460 = vpop.f32.mrf.mxu0
      %v461 = vadd.f32 %v382, %v460
      %v462 = vpop.f32.mrf.mxu0
      %v463 = vpop.f32.mrf.mxu0
      %v464 = vadd.f32 %v385, %v463
      %v465 = vpop.f32.mrf.mxu0
      %466 = vmatprep.mubr.bf16.mxu0 0
      %467 = vmatmul.mubr.bf16.gmra.mxu0 %v405
      %v468 = vpop.f32.mrf.mxu0
      %v469 = vadd.f32 %v390, %v468
      %v470 = vpop.f32.mrf.mxu0
      %v471 = vpop.f32.mrf.mxu0
      %v472 = vpop.f32.mrf.mxu0
      %473 = vdwg.mxu0
      %v474 = vld [vmem:[%s246] sm:$0xe]
      %s475 = scalar_lea.vmem %s1, 8
      %v476 = vld [vmem:[%s475] sm:$0xf]
      %v478 = vunpack.c.l.b16 %v474
      %v479 = vpack.c.b16 %v272, %v478
      %vm480 = vcmask 1046528
      %v481 = vrot.slane %v479, 1
      %v482 = vrot.slane %v279, 1
      %v483 = vsel %vm480, %v481, %v482
      %v484 = vrot.slane %v280, 1
      %v485 = vsel %vm480, %v482, %v484
      %v486 = vrot.slane %v281, 1
      %v487 = vsel %vm480, %v484, %v486
      %v489 = vsel %vm314, %v483, 0
      %v492 = vsel %vm314, %v485, 0
      %v495 = vsel %vm314, %v487, 0
      %v498 = vsel %vm314, %v486, 0
      %v501 = vsel %vm327, %v476, 0
      %503 = vmatprep.subr.bf16.mxu0 0
      %504 = vmatpush1.bf16.msra.mxu0 0
      %505 = vmatprep.subr.bf16.mxu0 0
      %506 = vmatpush1.bf16.msra.mxu0 0
      %507 = vmatprep.subr.bf16.mxu0 0
      %508 = vmatpush1.bf16.msra.mxu0 0
      %509 = vmatprep.subr.bf16.mxu0 0
      %510 = vmatpush1.bf16.msra.mxu0 0
      %511 = vmatprep.subr.bf16.mxu0 0
      %512 = vmatpush1.bf16.msra.mxu0 0
      %513 = vmatprep.subr.bf16.mxu0 0
      %514 = vmatpush1.bf16.msra.mxu0 0
      %515 = vmatprep.subr.bf16.mxu0 0
      %516 = vmatpush1.bf16.msra.mxu0 0
      %517 = vmatprep.subr.bf16.mxu0 0
      %518 = vmatpush1.bf16.msra.mxu0 %v501
      %519 = vmatprep.subr.bf16.mxu0 0
      %520 = vmatpush2.bf16.msra.mxu0 0
      %521 = vmatprep.subr.bf16.mxu0 0
      %522 = vmatpush2.bf16.msra.mxu0 0
      %523 = vmatprep.subr.bf16.mxu0 0
      %524 = vmatpush2.bf16.msra.mxu0 0
      %525 = vmatprep.subr.bf16.mxu0 0
      %526 = vmatpush2.bf16.msra.mxu0 0
      %527 = vmatprep.subr.bf16.mxu0 0
      %528 = vmatpush2.bf16.msra.mxu0 0
      %529 = vmatprep.subr.bf16.mxu0 0
      %530 = vmatpush2.bf16.msra.mxu0 0
      %531 = vmatprep.subr.bf16.mxu0 0
      %532 = vmatpush2.bf16.msra.mxu0 0
      %533 = vmatprep.subr.bf16.mxu0 0
      %534 = vmatpush2.bf16.msra.mxu0 0
      %535 = vmatprep.mubr.bf16.mxu0 0
      %536 = vmatmul.mubr.bf16.gmra.mxu0 %v489
      %v537 = vpop.f32.mrf.mxu0
      %v538 = vadd.f32 0.0, %v537
      %v539 = vpop.f32.mrf.mxu0
      %v540 = vpop.f32.mrf.mxu0
      %v541 = vadd.f32 0.0, %v540
      %v542 = vpop.f32.mrf.mxu0
      %543 = vmatprep.mubr.bf16.mxu0 0
      %544 = vmatmul.mubr.bf16.gmra.mxu0 %v492
      %v545 = vpop.f32.mrf.mxu0
      %v546 = vadd.f32 0.0, %v545
      %v547 = vpop.f32.mrf.mxu0
      %v548 = vpop.f32.mrf.mxu0
      %v549 = vadd.f32 0.0, %v548
      %v550 = vpop.f32.mrf.mxu0
      %551 = vmatprep.mubr.bf16.mxu0 0
      %552 = vmatmul.mubr.bf16.gmra.mxu0 %v495
      %v553 = vpop.f32.mrf.mxu0
      %v554 = vadd.f32 0.0, %v553
      %v555 = vpop.f32.mrf.mxu0
      %v556 = vpop.f32.mrf.mxu0
      %v557 = vadd.f32 0.0, %v556
      %v558 = vpop.f32.mrf.mxu0
      %559 = vmatprep.mubr.bf16.mxu0 0
      %560 = vmatmul.mubr.bf16.gmra.mxu0 %v498
      %v561 = vpop.f32.mrf.mxu0
      %v562 = vadd.f32 0.0, %v561
      %v563 = vpop.f32.mrf.mxu0
      %v564 = vpop.f32.mrf.mxu0
      %v565 = vpop.f32.mrf.mxu0
      %566 = vdwg.mxu0
      %v567 = vadd.f32 %v445, %v538
      %v568 = vadd.f32 %v448, %v541
      %v569 = vadd.f32 %v453, %v546
      %v570 = vadd.f32 %v456, %v549
      %v571 = vadd.f32 %v461, %v554
      %v572 = vadd.f32 %v464, %v557
      %v573 = vadd.f32 %v469, %v562
      %v574 = vld [vmem:[%s246 + $0x4] sm:$0xf]
      %v575 = vld [vmem:[%s246 + $0x8] sm:$0xf]
      %v576 = vld [vmem:[%s246 + $0xc] sm:$0xf]
      %v577 = vld [vmem:[%s246 + $0x10] sm:$0xf]
      %v578 = vld [vmem:[%s246 + $0x14] sm:$0xf]
      %v579 = vld [vmem:[%s246 + $0x18] sm:$0xf]
      %v580 = vld [vmem:[%s246 + $0x1c] sm:$0x1]
      %s581 = scalar_lea.vmem %s1, 12
      %v582 = vld [vmem:[%s581] sm:$0xf]
      %v590 = vunpack.c.l.b16 %v574
      %v591 = vunpack.c.l.b16 %v575
      %v592 = vunpack.c.l.b16 %v576
      %v593 = vunpack.c.l.b16 %v577
      %v594 = vunpack.c.l.b16 %v578
      %v595 = vunpack.c.l.b16 %v579
      %v596 = vunpack.c.l.b16 %v580
      %v597 = vpack.c.b16 %v591, %v590
      %v598 = vpack.c.b16 %v593, %v592
      %v599 = vpack.c.b16 %v595, %v594
      %v600 = vpack.c.b16 %v596, %v596
      %v602 = vsel %vm314, %v597, 0
      %v605 = vsel %vm314, %v598, 0
      %v608 = vsel %vm314, %v599, 0
      %v611 = vsel %vm314, %v600, 0
      %v614 = vsel %vm327, %v582, 0
      %616 = vmatprep.subr.bf16.mxu0 0
      %617 = vmatpush1.bf16.msra.mxu0 0
      %618 = vmatprep.subr.bf16.mxu0 0
      %619 = vmatpush1.bf16.msra.mxu0 0
      %620 = vmatprep.subr.bf16.mxu0 0
      %621 = vmatpush1.bf16.msra.mxu0 0
      %622 = vmatprep.subr.bf16.mxu0 0
      %623 = vmatpush1.bf16.msra.mxu0 0
      %624 = vmatprep.subr.bf16.mxu0 0
      %625 = vmatpush1.bf16.msra.mxu0 0
      %626 = vmatprep.subr.bf16.mxu0 0
      %627 = vmatpush1.bf16.msra.mxu0 0
      %628 = vmatprep.subr.bf16.mxu0 0
      %629 = vmatpush1.bf16.msra.mxu0 0
      %630 = vmatprep.subr.bf16.mxu0 0
      %631 = vmatpush1.bf16.msra.mxu0 %v614
      %632 = vmatprep.subr.bf16.mxu0 0
      %633 = vmatpush2.bf16.msra.mxu0 0
      %634 = vmatprep.subr.bf16.mxu0 0
      %635 = vmatpush2.bf16.msra.mxu0 0
      %636 = vmatprep.subr.bf16.mxu0 0
      %637 = vmatpush2.bf16.msra.mxu0 0
      %638 = vmatprep.subr.bf16.mxu0 0
      %639 = vmatpush2.bf16.msra.mxu0 0
      %640 = vmatprep.subr.bf16.mxu0 0
      %641 = vmatpush2.bf16.msra.mxu0 0
      %642 = vmatprep.subr.bf16.mxu0 0
      %643 = vmatpush2.bf16.msra.mxu0 0
      %644 = vmatprep.subr.bf16.mxu0 0
      %645 = vmatpush2.bf16.msra.mxu0 0
      %646 = vmatprep.subr.bf16.mxu0 0
      %647 = vmatpush2.bf16.msra.mxu0 0
      %648 = vmatprep.mubr.bf16.mxu0 0
      %649 = vmatmul.mubr.bf16.gmra.mxu0 %v602
      %v650 = vpop.f32.mrf.mxu0
      %v651 = vadd.f32 0.0, %v650
      %v652 = vpop.f32.mrf.mxu0
      %v653 = vpop.f32.mrf.mxu0
      %v654 = vadd.f32 0.0, %v653
      %v655 = vpop.f32.mrf.mxu0
      %656 = vmatprep.mubr.bf16.mxu0 0
      %657 = vmatmul.mubr.bf16.gmra.mxu0 %v605
      %v658 = vpop.f32.mrf.mxu0
      %v659 = vadd.f32 0.0, %v658
      %v660 = vpop.f32.mrf.mxu0
      %v661 = vpop.f32.mrf.mxu0
      %v662 = vadd.f32 0.0, %v661
      %v663 = vpop.f32.mrf.mxu0
      %664 = vmatprep.mubr.bf16.mxu0 0
      %665 = vmatmul.mubr.bf16.gmra.mxu0 %v608
      %v666 = vpop.f32.mrf.mxu0
      %v667 = vadd.f32 0.0, %v666
      %v668 = vpop.f32.mrf.mxu0
      %v669 = vpop.f32.mrf.mxu0
      %v670 = vadd.f32 0.0, %v669
      %v671 = vpop.f32.mrf.mxu0
      %672 = vmatprep.mubr.bf16.mxu0 0
      %673 = vmatmul.mubr.bf16.gmra.mxu0 %v611
      %v674 = vpop.f32.mrf.mxu0
      %v675 = vadd.f32 0.0, %v674
      %v676 = vpop.f32.mrf.mxu0
      %v677 = vpop.f32.mrf.mxu0
      %v678 = vpop.f32.mrf.mxu0
      %679 = vdwg.mxu0
      %v680 = vadd.f32 %v567, %v651
      %v681 = vadd.f32 %v568, %v654
      %v682 = vadd.f32 %v569, %v659
      %v683 = vadd.f32 %v570, %v662
      %v684 = vadd.f32 %v571, %v667
      %v685 = vadd.f32 %v572, %v670
      %v686 = vadd.f32 %v573, %v675
      %v687 = vld [vmem:[%s246 + $0x1c] sm:$0x3]
      %s688 = scalar_lea.vmem %s1, 16
      %v689 = vld [vmem:[%s688] sm:$0xf]
      %v691 = vunpack.c.l.b16 %v687
      %v692 = vpack.c.b16 %v691, %v691
      %v693 = vshrl.u32 %v597, 16
      %v695 = vshll.u32 %v597, 16
      %v697 = vrot.slane %v695, 1
      %v698 = vor.u32 %v693, %v697
      %v699 = vshll.u32 %v598, 16
      %v701 = vrot.slane %v699, 1
      %v702 = vsel %vm282, %v698, %v701
      %v703 = vshrl.u32 %v598, 16
      %v705 = vor.u32 %v703, %v701
      %v706 = vshll.u32 %v599, 16
      %v708 = vrot.slane %v706, 1
      %v709 = vsel %vm282, %v705, %v708
      %v710 = vshrl.u32 %v599, 16
      %v712 = vor.u32 %v710, %v708
      %v714 = vshll.u32 %v692, 16
      %v716 = vrot.slane %v714, 1
      %v717 = vsel %vm282, %v712, %v716
      %v718 = vshrl.u32 %v692, 16
      %v720 = vor.u32 %v718, %v716
      %v722 = vsel %vm314, %v702, 0
      %v725 = vsel %vm314, %v709, 0
      %v728 = vsel %vm314, %v717, 0
      %v731 = vsel %vm314, %v720, 0
      %v734 = vsel %vm327, %v689, 0
      %736 = vmatprep.subr.bf16.mxu0 0
      %737 = vmatpush1.bf16.msra.mxu0 0
      %738 = vmatprep.subr.bf16.mxu0 0
      %739 = vmatpush1.bf16.msra.mxu0 0
      %740 = vmatprep.subr.bf16.mxu0 0
      %741 = vmatpush1.bf16.msra.mxu0 0
      %742 = vmatprep.subr.bf16.mxu0 0
      %743 = vmatpush1.bf16.msra.mxu0 0
      %744 = vmatprep.subr.bf16.mxu0 0
      %745 = vmatpush1.bf16.msra.mxu0 0
      %746 = vmatprep.subr.bf16.mxu0 0
      %747 = vmatpush1.bf16.msra.mxu0 0
      %748 = vmatprep.subr.bf16.mxu0 0
      %749 = vmatpush1.bf16.msra.mxu0 0
      %750 = vmatprep.subr.bf16.mxu0 0
      %751 = vmatpush1.bf16.msra.mxu0 %v734
      %752 = vmatprep.subr.bf16.mxu0 0
      %753 = vmatpush2.bf16.msra.mxu0 0
      %754 = vmatprep.subr.bf16.mxu0 0
      %755 = vmatpush2.bf16.msra.mxu0 0
      %756 = vmatprep.subr.bf16.mxu0 0
      %757 = vmatpush2.bf16.msra.mxu0 0
      %758 = vmatprep.subr.bf16.mxu0 0
      %759 = vmatpush2.bf16.msra.mxu0 0
      %760 = vmatprep.subr.bf16.mxu0 0
      %761 = vmatpush2.bf16.msra.mxu0 0
      %762 = vmatprep.subr.bf16.mxu0 0
      %763 = vmatpush2.bf16.msra.mxu0 0
      %764 = vmatprep.subr.bf16.mxu0 0
      %765 = vmatpush2.bf16.msra.mxu0 0
      %766 = vmatprep.subr.bf16.mxu0 0
      %767 = vmatpush2.bf16.msra.mxu0 0
      %768 = vmatprep.mubr.bf16.mxu0 0
      %769 = vmatmul.mubr.bf16.gmra.mxu0 %v722
      %v770 = vpop.f32.mrf.mxu0
      %v771 = vadd.f32 0.0, %v770
      %v772 = vpop.f32.mrf.mxu0
      %v773 = vpop.f32.mrf.mxu0
      %v774 = vadd.f32 0.0, %v773
      %v775 = vpop.f32.mrf.mxu0
      %776 = vmatprep.mubr.bf16.mxu0 0
      %777 = vmatmul.mubr.bf16.gmra.mxu0 %v725
      %v778 = vpop.f32.mrf.mxu0
      %v779 = vadd.f32 0.0, %v778
      %v780 = vpop.f32.mrf.mxu0
      %v781 = vpop.f32.mrf.mxu0
      %v782 = vadd.f32 0.0, %v781
      %v783 = vpop.f32.mrf.mxu0
      %784 = vmatprep.mubr.bf16.mxu0 0
      %785 = vmatmul.mubr.bf16.gmra.mxu0 %v728
      %v786 = vpop.f32.mrf.mxu0
      %v787 = vadd.f32 0.0, %v786
      %v788 = vpop.f32.mrf.mxu0
      %v789 = vpop.f32.mrf.mxu0
      %v790 = vadd.f32 0.0, %v789
      %v791 = vpop.f32.mrf.mxu0
      %792 = vmatprep.mubr.bf16.mxu0 0
      %793 = vmatmul.mubr.bf16.gmra.mxu0 %v731
      %v794 = vpop.f32.mrf.mxu0
      %v795 = vadd.f32 0.0, %v794
      %v796 = vpop.f32.mrf.mxu0
      %v797 = vpop.f32.mrf.mxu0
      %v798 = vpop.f32.mrf.mxu0
      %799 = vdwg.mxu0
      %v800 = vadd.f32 %v680, %v771
      %v801 = vadd.f32 %v681, %v774
      %v802 = vadd.f32 %v682, %v779
      %v803 = vadd.f32 %v683, %v782
      %v804 = vadd.f32 %v684, %v787
      %v805 = vadd.f32 %v685, %v790
      %v806 = vadd.f32 %v686, %v795
      %v807 = vld [vmem:[%s246 + $0x4] sm:$0xe]
      %s808 = scalar_lea.vmem %s1, 20
      %v809 = vld [vmem:[%s808] sm:$0xf]
      %v811 = vunpack.c.l.b16 %v807
      %v812 = vpack.c.b16 %v591, %v811
      %v813 = vrot.slane %v812, 1
      %v814 = vrot.slane %v598, 1
      %v815 = vsel %vm480, %v813, %v814
      %v816 = vrot.slane %v599, 1
      %v817 = vsel %vm480, %v814, %v816
      %v818 = vrot.slane %v692, 1
      %v819 = vsel %vm480, %v816, %v818
      %v821 = vsel %vm314, %v815, 0
      %v824 = vsel %vm314, %v817, 0
      %v827 = vsel %vm314, %v819, 0
      %v830 = vsel %vm314, %v818, 0
      %v833 = vsel %vm327, %v809, 0
      %835 = vmatprep.subr.bf16.mxu0 0
      %836 = vmatpush1.bf16.msra.mxu0 0
      %837 = vmatprep.subr.bf16.mxu0 0
      %838 = vmatpush1.bf16.msra.mxu0 0
      %839 = vmatprep.subr.bf16.mxu0 0
      %840 = vmatpush1.bf16.msra.mxu0 0
      %841 = vmatprep.subr.bf16.mxu0 0
      %842 = vmatpush1.bf16.msra.mxu0 0
      %843 = vmatprep.subr.bf16.mxu0 0
      %844 = vmatpush1.bf16.msra.mxu0 0
      %845 = vmatprep.subr.bf16.mxu0 0
      %846 = vmatpush1.bf16.msra.mxu0 0
      %847 = vmatprep.subr.bf16.mxu0 0
      %848 = vmatpush1.bf16.msra.mxu0 0
      %849 = vmatprep.subr.bf16.mxu0 0
      %850 = vmatpush1.bf16.msra.mxu0 %v833
      %851 = vmatprep.subr.bf16.mxu0 0
      %852 = vmatpush2.bf16.msra.mxu0 0
      %853 = vmatprep.subr.bf16.mxu0 0
      %854 = vmatpush2.bf16.msra.mxu0 0
      %855 = vmatprep.subr.bf16.mxu0 0
      %856 = vmatpush2.bf16.msra.mxu0 0
      %857 = vmatprep.subr.bf16.mxu0 0
      %858 = vmatpush2.bf16.msra.mxu0 0
      %859 = vmatprep.subr.bf16.mxu0 0
      %860 = vmatpush2.bf16.msra.mxu0 0
      %861 = vmatprep.subr.bf16.mxu0 0
      %862 = vmatpush2.bf16.msra.mxu0 0
      %863 = vmatprep.subr.bf16.mxu0 0
      %864 = vmatpush2.bf16.msra.mxu0 0
      %865 = vmatprep.subr.bf16.mxu0 0
      %866 = vmatpush2.bf16.msra.mxu0 0
      %867 = vmatprep.mubr.bf16.mxu0 0
      %868 = vmatmul.mubr.bf16.gmra.mxu0 %v821
      %v869 = vpop.f32.mrf.mxu0
      %v870 = vadd.f32 0.0, %v869
      %v871 = vpop.f32.mrf.mxu0
      %v872 = vpop.f32.mrf.mxu0
      %v873 = vadd.f32 0.0, %v872
      %v874 = vpop.f32.mrf.mxu0
      %875 = vmatprep.mubr.bf16.mxu0 0
      %876 = vmatmul.mubr.bf16.gmra.mxu0 %v824
      %v877 = vpop.f32.mrf.mxu0
      %v878 = vadd.f32 0.0, %v877
      %v879 = vpop.f32.mrf.mxu0
      %v880 = vpop.f32.mrf.mxu0
      %v881 = vadd.f32 0.0, %v880
      %v882 = vpop.f32.mrf.mxu0
      %883 = vmatprep.mubr.bf16.mxu0 0
      %884 = vmatmul.mubr.bf16.gmra.mxu0 %v827
      %v885 = vpop.f32.mrf.mxu0
      %v886 = vadd.f32 0.0, %v885
      %v887 = vpop.f32.mrf.mxu0
      %v888 = vpop.f32.mrf.mxu0
      %v889 = vadd.f32 0.0, %v888
      %v890 = vpop.f32.mrf.mxu0
      %891 = vmatprep.mubr.bf16.mxu0 0
      %892 = vmatmul.mubr.bf16.gmra.mxu0 %v830
      %v893 = vpop.f32.mrf.mxu0
      %v894 = vadd.f32 0.0, %v893
      %v895 = vpop.f32.mrf.mxu0
      %v896 = vpop.f32.mrf.mxu0
      %v897 = vpop.f32.mrf.mxu0
      %898 = vdwg.mxu0
      %v899 = vadd.f32 %v800, %v870
      %v900 = vadd.f32 %v801, %v873
      %v901 = vadd.f32 %v802, %v878
      %v902 = vadd.f32 %v803, %v881
      %v903 = vadd.f32 %v804, %v886
      %v904 = vadd.f32 %v805, %v889
      %v905 = vadd.f32 %v806, %v894
      %v906 = vld [vmem:[%s246 + $0x8] sm:$0xf]
      %v907 = vld [vmem:[%s246 + $0xc] sm:$0xf]
      %v908 = vld [vmem:[%s246 + $0x10] sm:$0xf]
      %v909 = vld [vmem:[%s246 + $0x14] sm:$0xf]
      %v910 = vld [vmem:[%s246 + $0x18] sm:$0xf]
      %v911 = vld [vmem:[%s246 + $0x1c] sm:$0xf]
      %v912 = vld [vmem:[%s246 + $0x20] sm:$0x1]
      %s913 = scalar_lea.vmem %s1, 24
      %v914 = vld [vmem:[%s913] sm:$0xf]
      %v922 = vunpack.c.l.b16 %v906
      %v923 = vunpack.c.l.b16 %v907
      %v924 = vunpack.c.l.b16 %v908
      %v925 = vunpack.c.l.b16 %v909
      %v926 = vunpack.c.l.b16 %v910
      %v927 = vunpack.c.l.b16 %v911
      %v928 = vunpack.c.l.b16 %v912
      %v929 = vpack.c.b16 %v923, %v922
      %v930 = vpack.c.b16 %v925, %v924
      %v931 = vpack.c.b16 %v927, %v926
      %v932 = vpack.c.b16 %v928, %v928
      %v934 = vsel %vm314, %v929, 0
      %v937 = vsel %vm314, %v930, 0
      %v940 = vsel %vm314, %v931, 0
      %v943 = vsel %vm314, %v932, 0
      %v946 = vsel %vm327, %v914, 0
      %948 = vmatprep.subr.bf16.mxu0 0
      %949 = vmatpush1.bf16.msra.mxu0 0
      %950 = vmatprep.subr.bf16.mxu0 0
      %951 = vmatpush1.bf16.msra.mxu0 0
      %952 = vmatprep.subr.bf16.mxu0 0
      %953 = vmatpush1.bf16.msra.mxu0 0
      %954 = vmatprep.subr.bf16.mxu0 0
      %955 = vmatpush1.bf16.msra.mxu0 0
      %956 = vmatprep.subr.bf16.mxu0 0
      %957 = vmatpush1.bf16.msra.mxu0 0
      %958 = vmatprep.subr.bf16.mxu0 0
      %959 = vmatpush1.bf16.msra.mxu0 0
      %960 = vmatprep.subr.bf16.mxu0 0
      %961 = vmatpush1.bf16.msra.mxu0 0
      %962 = vmatprep.subr.bf16.mxu0 0
      %963 = vmatpush1.bf16.msra.mxu0 %v946
      %964 = vmatprep.subr.bf16.mxu0 0
      %965 = vmatpush2.bf16.msra.mxu0 0
      %966 = vmatprep.subr.bf16.mxu0 0
      %967 = vmatpush2.bf16.msra.mxu0 0
      %968 = vmatprep.subr.bf16.mxu0 0
      %969 = vmatpush2.bf16.msra.mxu0 0
      %970 = vmatprep.subr.bf16.mxu0 0
      %971 = vmatpush2.bf16.msra.mxu0 0
      %972 = vmatprep.subr.bf16.mxu0 0
      %973 = vmatpush2.bf16.msra.mxu0 0
      %974 = vmatprep.subr.bf16.mxu0 0
      %975 = vmatpush2.bf16.msra.mxu0 0
      %976 = vmatprep.subr.bf16.mxu0 0
      %977 = vmatpush2.bf16.msra.mxu0 0
      %978 = vmatprep.subr.bf16.mxu0 0
      %979 = vmatpush2.bf16.msra.mxu0 0
      %980 = vmatprep.mubr.bf16.mxu0 0
      %981 = vmatmul.mubr.bf16.gmra.mxu0 %v934
      %v982 = vpop.f32.mrf.mxu0
      %v983 = vadd.f32 0.0, %v982
      %v984 = vpop.f32.mrf.mxu0
      %v985 = vpop.f32.mrf.mxu0
      %v986 = vadd.f32 0.0, %v985
      %v987 = vpop.f32.mrf.mxu0
      %988 = vmatprep.mubr.bf16.mxu0 0
      %989 = vmatmul.mubr.bf16.gmra.mxu0 %v937
      %v990 = vpop.f32.mrf.mxu0
      %v991 = vadd.f32 0.0, %v990
      %v992 = vpop.f32.mrf.mxu0
      %v993 = vpop.f32.mrf.mxu0
      %v994 = vadd.f32 0.0, %v993
      %v995 = vpop.f32.mrf.mxu0
      %996 = vmatprep.mubr.bf16.mxu0 0
      %997 = vmatmul.mubr.bf16.gmra.mxu0 %v940
      %v998 = vpop.f32.mrf.mxu0
      %v999 = vadd.f32 0.0, %v998
      %v1000 = vpop.f32.mrf.mxu0
      %v1001 = vpop.f32.mrf.mxu0
      %v1002 = vadd.f32 0.0, %v1001
      %v1003 = vpop.f32.mrf.mxu0
      %1004 = vmatprep.mubr.bf16.mxu0 0
      %1005 = vmatmul.mubr.bf16.gmra.mxu0 %v943
      %v1006 = vpop.f32.mrf.mxu0
      %v1007 = vadd.f32 0.0, %v1006
      %v1008 = vpop.f32.mrf.mxu0
      %v1009 = vpop.f32.mrf.mxu0
      %v1010 = vpop.f32.mrf.mxu0
      %1011 = vdwg.mxu0
      %v1012 = vadd.f32 %v899, %v983
      %v1013 = vadd.f32 %v900, %v986
      %v1014 = vadd.f32 %v901, %v991
      %v1015 = vadd.f32 %v902, %v994
      %v1016 = vadd.f32 %v903, %v999
      %v1017 = vadd.f32 %v904, %v1002
      %v1018 = vadd.f32 %v905, %v1007
      %v1019 = vld [vmem:[%s246 + $0x20] sm:$0x3]
      %s1020 = scalar_lea.vmem %s1, 28
      %v1021 = vld [vmem:[%s1020] sm:$0xf]
      %v1023 = vunpack.c.l.b16 %v1019
      %v1024 = vpack.c.b16 %v1023, %v1023
      %v1025 = vshrl.u32 %v929, 16
      %v1027 = vshll.u32 %v929, 16
      %v1029 = vrot.slane %v1027, 1
      %v1030 = vor.u32 %v1025, %v1029
      %v1031 = vshll.u32 %v930, 16
      %v1033 = vrot.slane %v1031, 1
      %v1034 = vsel %vm282, %v1030, %v1033
      %v1035 = vshrl.u32 %v930, 16
      %v1037 = vor.u32 %v1035, %v1033
      %v1038 = vshll.u32 %v931, 16
      %v1040 = vrot.slane %v1038, 1
      %v1041 = vsel %vm282, %v1037, %v1040
      %v1042 = vshrl.u32 %v931, 16
      %v1044 = vor.u32 %v1042, %v1040
      %v1046 = vshll.u32 %v1024, 16
      %v1048 = vrot.slane %v1046, 1
      %v1049 = vsel %vm282, %v1044, %v1048
      %v1050 = vshrl.u32 %v1024, 16
      %v1052 = vor.u32 %v1050, %v1048
      %v1054 = vsel %vm314, %v1034, 0
      %v1057 = vsel %vm314, %v1041, 0
      %v1060 = vsel %vm314, %v1049, 0
      %v1063 = vsel %vm314, %v1052, 0
      %v1066 = vsel %vm327, %v1021, 0
      %1068 = vmatprep.subr.bf16.mxu0 0
      %1069 = vmatpush1.bf16.msra.mxu0 0
      %1070 = vmatprep.subr.bf16.mxu0 0
      %1071 = vmatpush1.bf16.msra.mxu0 0
      %1072 = vmatprep.subr.bf16.mxu0 0
      %1073 = vmatpush1.bf16.msra.mxu0 0
      %1074 = vmatprep.subr.bf16.mxu0 0
      %1075 = vmatpush1.bf16.msra.mxu0 0
      %1076 = vmatprep.subr.bf16.mxu0 0
      %1077 = vmatpush1.bf16.msra.mxu0 0
      %1078 = vmatprep.subr.bf16.mxu0 0
      %1079 = vmatpush1.bf16.msra.mxu0 0
      %1080 = vmatprep.subr.bf16.mxu0 0
      %1081 = vmatpush1.bf16.msra.mxu0 0
      %1082 = vmatprep.subr.bf16.mxu0 0
      %1083 = vmatpush1.bf16.msra.mxu0 %v1066
      %1084 = vmatprep.subr.bf16.mxu0 0
      %1085 = vmatpush2.bf16.msra.mxu0 0
      %1086 = vmatprep.subr.bf16.mxu0 0
      %1087 = vmatpush2.bf16.msra.mxu0 0
      %1088 = vmatprep.subr.bf16.mxu0 0
      %1089 = vmatpush2.bf16.msra.mxu0 0
      %1090 = vmatprep.subr.bf16.mxu0 0
      %1091 = vmatpush2.bf16.msra.mxu0 0
      %1092 = vmatprep.subr.bf16.mxu0 0
      %1093 = vmatpush2.bf16.msra.mxu0 0
      %1094 = vmatprep.subr.bf16.mxu0 0
      %1095 = vmatpush2.bf16.msra.mxu0 0
      %1096 = vmatprep.subr.bf16.mxu0 0
      %1097 = vmatpush2.bf16.msra.mxu0 0
      %1098 = vmatprep.subr.bf16.mxu0 0
      %1099 = vmatpush2.bf16.msra.mxu0 0
      %1100 = vmatprep.mubr.bf16.mxu0 0
      %1101 = vmatmul.mubr.bf16.gmra.mxu0 %v1054
      %v1102 = vpop.f32.mrf.mxu0
      %v1103 = vadd.f32 0.0, %v1102
      %v1104 = vpop.f32.mrf.mxu0
      %v1105 = vpop.f32.mrf.mxu0
      %v1106 = vadd.f32 0.0, %v1105
      %v1107 = vpop.f32.mrf.mxu0
      %1108 = vmatprep.mubr.bf16.mxu0 0
      %1109 = vmatmul.mubr.bf16.gmra.mxu0 %v1057
      %v1110 = vpop.f32.mrf.mxu0
      %v1111 = vadd.f32 0.0, %v1110
      %v1112 = vpop.f32.mrf.mxu0
      %v1113 = vpop.f32.mrf.mxu0
      %v1114 = vadd.f32 0.0, %v1113
      %v1115 = vpop.f32.mrf.mxu0
      %1116 = vmatprep.mubr.bf16.mxu0 0
      %1117 = vmatmul.mubr.bf16.gmra.mxu0 %v1060
      %v1118 = vpop.f32.mrf.mxu0
      %v1119 = vadd.f32 0.0, %v1118
      %v1120 = vpop.f32.mrf.mxu0
      %v1121 = vpop.f32.mrf.mxu0
      %v1122 = vadd.f32 0.0, %v1121
      %v1123 = vpop.f32.mrf.mxu0
      %1124 = vmatprep.mubr.bf16.mxu0 0
      %1125 = vmatmul.mubr.bf16.gmra.mxu0 %v1063
      %v1126 = vpop.f32.mrf.mxu0
      %v1127 = vadd.f32 0.0, %v1126
      %v1128 = vpop.f32.mrf.mxu0
      %v1129 = vpop.f32.mrf.mxu0
      %v1130 = vpop.f32.mrf.mxu0
      %1131 = vdwg.mxu0
      %v1132 = vadd.f32 %v1012, %v1103
      %v1133 = vadd.f32 %v1013, %v1106
      %v1134 = vadd.f32 %v1014, %v1111
      %v1135 = vadd.f32 %v1015, %v1114
      %v1136 = vadd.f32 %v1016, %v1119
      %v1137 = vadd.f32 %v1017, %v1122
      %v1138 = vadd.f32 %v1018, %v1127
      %v1139 = vld [vmem:[%s246 + $0x8] sm:$0xe]
      %s1140 = scalar_lea.vmem %s1, 32
      %v1141 = vld [vmem:[%s1140] sm:$0xf]
      %v1143 = vunpack.c.l.b16 %v1139
      %v1144 = vpack.c.b16 %v923, %v1143
      %v1145 = vrot.slane %v1144, 1
      %v1146 = vrot.slane %v930, 1
      %v1147 = vsel %vm480, %v1145, %v1146
      %v1148 = vrot.slane %v931, 1
      %v1149 = vsel %vm480, %v1146, %v1148
      %v1150 = vrot.slane %v1024, 1
      %v1151 = vsel %vm480, %v1148, %v1150
      %v1153 = vsel %vm314, %v1147, 0
      %v1156 = vsel %vm314, %v1149, 0
      %v1159 = vsel %vm314, %v1151, 0
      %v1162 = vsel %vm314, %v1150, 0
      %v1165 = vsel %vm327, %v1141, 0
      %1167 = vmatprep.subr.bf16.mxu0 0
      %1168 = vmatpush1.bf16.msra.mxu0 0
      %1169 = vmatprep.subr.bf16.mxu0 0
      %1170 = vmatpush1.bf16.msra.mxu0 0
      %1171 = vmatprep.subr.bf16.mxu0 0
      %1172 = vmatpush1.bf16.msra.mxu0 0
      %1173 = vmatprep.subr.bf16.mxu0 0
      %1174 = vmatpush1.bf16.msra.mxu0 0
      %1175 = vmatprep.subr.bf16.mxu0 0
      %1176 = vmatpush1.bf16.msra.mxu0 0
      %1177 = vmatprep.subr.bf16.mxu0 0
      %1178 = vmatpush1.bf16.msra.mxu0 0
      %1179 = vmatprep.subr.bf16.mxu0 0
      %1180 = vmatpush1.bf16.msra.mxu0 0
      %1181 = vmatprep.subr.bf16.mxu0 0
      %1182 = vmatpush1.bf16.msra.mxu0 %v1165
      %1183 = vmatprep.subr.bf16.mxu0 0
      %1184 = vmatpush2.bf16.msra.mxu0 0
      %1185 = vmatprep.subr.bf16.mxu0 0
      %1186 = vmatpush2.bf16.msra.mxu0 0
      %1187 = vmatprep.subr.bf16.mxu0 0
      %1188 = vmatpush2.bf16.msra.mxu0 0
      %1189 = vmatprep.subr.bf16.mxu0 0
      %1190 = vmatpush2.bf16.msra.mxu0 0
      %1191 = vmatprep.subr.bf16.mxu0 0
      %1192 = vmatpush2.bf16.msra.mxu0 0
      %1193 = vmatprep.subr.bf16.mxu0 0
      %1194 = vmatpush2.bf16.msra.mxu0 0
      %1195 = vmatprep.subr.bf16.mxu0 0
      %1196 = vmatpush2.bf16.msra.mxu0 0
      %1197 = vmatprep.subr.bf16.mxu0 0
      %1198 = vmatpush2.bf16.msra.mxu0 0
      %1199 = vmatprep.mubr.bf16.mxu0 0
      %1200 = vmatmul.mubr.bf16.gmra.mxu0 %v1153
      %v1201 = vpop.f32.mrf.mxu0
      %v1202 = vadd.f32 0.0, %v1201
      %v1203 = vpop.f32.mrf.mxu0
      %v1204 = vpop.f32.mrf.mxu0
      %v1205 = vadd.f32 0.0, %v1204
      %v1206 = vpop.f32.mrf.mxu0
      %1207 = vmatprep.mubr.bf16.mxu0 0
      %1208 = vmatmul.mubr.bf16.gmra.mxu0 %v1156
      %v1209 = vpop.f32.mrf.mxu0
      %v1210 = vadd.f32 0.0, %v1209
      %v1211 = vpop.f32.mrf.mxu0
      %v1212 = vpop.f32.mrf.mxu0
      %v1213 = vadd.f32 0.0, %v1212
      %v1214 = vpop.f32.mrf.mxu0
      %1215 = vmatprep.mubr.bf16.mxu0 0
      %1216 = vmatmul.mubr.bf16.gmra.mxu0 %v1159
      %v1217 = vpop.f32.mrf.mxu0
      %v1218 = vadd.f32 0.0, %v1217
      %v1219 = vpop.f32.mrf.mxu0
      %v1220 = vpop.f32.mrf.mxu0
      %v1221 = vadd.f32 0.0, %v1220
      %v1222 = vpop.f32.mrf.mxu0
      %1223 = vmatprep.mubr.bf16.mxu0 0
      %1224 = vmatmul.mubr.bf16.gmra.mxu0 %v1162
      %v1225 = vpop.f32.mrf.mxu0
      %v1226 = vadd.f32 0.0, %v1225
      %v1227 = vpop.f32.mrf.mxu0
      %v1228 = vpop.f32.mrf.mxu0
      %v1229 = vpop.f32.mrf.mxu0
      %1230 = vdwg.mxu0
      %v1231 = vadd.f32 %v1132, %v1202
      %v1232 = vadd.f32 %v1133, %v1205
      %v1233 = vadd.f32 %v1134, %v1210
      %v1234 = vadd.f32 %v1135, %v1213
      %v1235 = vadd.f32 %v1136, %v1218
      %v1236 = vadd.f32 %v1137, %v1221
      %v1237 = vadd.f32 %v1138, %v1226
      %v1238 = vld [vmem:[%s2] sm:$0x1]
      %v1240 = vlaneseq
      %v1241 = vshrl.u32 %v1240, 7
      %v1242 = vsub.s32 0, %v1241
      %v1243 = vrot.slane %v1238, %v1242
      %v1245 = vadd.f32 %v1231, %v1243
      %v1246 = vadd.f32 %v1232, %v1243
      %v1247 = vadd.f32 %v1233, %v1243
      %v1248 = vadd.f32 %v1234, %v1243
      %v1249 = vadd.f32 %v1235, %v1243
      %v1250 = vadd.f32 %v1236, %v1243
      %v1251 = vadd.f32 %v1237, %v1243
      %v1252 = vmul.f32 %v1245, 0.5
      %v1253 = vmul.f32 %v1246, 0.5
      %v1254 = vmul.f32 %v1247, 0.5
      %v1255 = vmul.f32 %v1248, 0.5
      %v1256 = vmul.f32 %v1249, 0.5
      %v1257 = vmul.f32 %v1250, 0.5
      %v1258 = vmul.f32 %v1251, 0.5
      %v1259 = vmul.f32 %v1245, 0.70710677
      %v1260 = vmul.f32 %v1246, 0.70710677
      %v1261 = vmul.f32 %v1247, 0.70710677
      %v1262 = vmul.f32 %v1248, 0.70710677
      %v1263 = vmul.f32 %v1249, 0.70710677
      %v1264 = vmul.f32 %v1250, 0.70710677
      %v1265 = vmul.f32 %v1251, 0.70710677
      %v1266 = verf.f32.pop %v1259
      %v1267 = verf.f32.pop %v1260
      %v1268 = verf.f32.pop %v1261
      %v1269 = verf.f32.pop %v1262
      %v1270 = verf.f32.pop %v1263
      %v1271 = verf.f32.pop %v1264
      %v1272 = verf.f32.pop %v1265
      %v1273 = vadd.f32 %v1266, 1.0
      %v1274 = vadd.f32 %v1267, 1.0
      %v1275 = vadd.f32 %v1268, 1.0
      %v1276 = vadd.f32 %v1269, 1.0
      %v1277 = vadd.f32 %v1270, 1.0
      %v1278 = vadd.f32 %v1271, 1.0
      %v1279 = vadd.f32 %v1272, 1.0
      %v1280 = vmul.f32 %v1252, %v1273
      %v1281 = vmul.f32 %v1253, %v1274
      %v1282 = vmul.f32 %v1254, %v1275
      %v1283 = vmul.f32 %v1255, %v1276
      %v1284 = vmul.f32 %v1256, %v1277
      %v1285 = vmul.f32 %v1257, %v1278
      %v1286 = vmul.f32 %v1258, %v1279
      %v1287 = vld [vmem:[%s3] sm:$0xff]
      %v1288 = vld [vmem:[%s3 + $0x8] sm:$0xff]
      %v1289 = vld [vmem:[%s3 + $0x10] sm:$0xff]
      %v1290 = vld [vmem:[%s3 + $0x18] sm:$0xff]
      %v1291 = vld [vmem:[%s3 + $0x20] sm:$0xff]
      %v1292 = vld [vmem:[%s3 + $0x28] sm:$0xff]
      %v1293 = vld [vmem:[%s3 + $0x30] sm:$0x3]
      %1295 = vset.pattern.permute.xlu0 0
      %1296 = vperm.xlu0 %1295, %v1287
      %v1297 = vpop.permute.xlu0 %1296
      %1300 = vset.pattern.permute.xlu0 0
      %1301 = vperm.xlu0 %1300, %v1288
      %v1302 = vpop.permute.xlu0 %1301
      %1305 = vset.pattern.permute.xlu0 0
      %1306 = vperm.xlu0 %1305, %v1289
      %v1307 = vpop.permute.xlu0 %1306
      %1310 = vset.pattern.permute.xlu0 0
      %1311 = vperm.xlu0 %1310, %v1290
      %v1312 = vpop.permute.xlu0 %1311
      %1315 = vset.pattern.permute.xlu0 0
      %1316 = vperm.xlu0 %1315, %v1291
      %v1317 = vpop.permute.xlu0 %1316
      %1320 = vset.pattern.permute.xlu0 0
      %1321 = vperm.xlu0 %1320, %v1292
      %v1322 = vpop.permute.xlu0 %1321
      %1325 = vset.pattern.permute.xlu0 0
      %1326 = vperm.xlu0 %1325, %v1293
      %v1327 = vpop.permute.xlu0 %1326
      %v1329 = vmul.f32 %v1280, %v1297
      %v1330 = vmul.f32 %v1281, %v1302
      %v1331 = vmul.f32 %v1282, %v1307
      %v1332 = vmul.f32 %v1283, %v1312
      %v1333 = vmul.f32 %v1284, %v1317
      %v1334 = vmul.f32 %v1285, %v1322
      %v1335 = vmul.f32 %v1286, %v1327
      %v1336 = vpack.c.bf16 %v1330, %v1329
      %v1337 = vpack.c.bf16 %v1332, %v1331
      %v1338 = vpack.c.bf16 %v1334, %v1333
      %v1339 = vpack.c.bf16 %v1335, %v1335
      %v1344 = vunpack.c.l.b16 %v1336
      %v1345 = vunpack.c.h.b16 %v1336
      %v1346 = vunpack.c.l.b16 %v1337
      %v1347 = vunpack.c.h.b16 %v1337
      %v1348 = vunpack.c.l.b16 %v1338
      %v1349 = vunpack.c.h.b16 %v1338
      %v1350 = vunpack.c.l.b16 %v1339
      %v1351 = vpack.c.b16 %v1344, %v1344
      %v1352 = vpack.c.b16 %v1345, %v1345
      %v1353 = vpack.c.b16 %v1346, %v1346
      %v1354 = vpack.c.b16 %v1347, %v1347
      %v1355 = vpack.c.b16 %v1348, %v1348
      %v1356 = vpack.c.b16 %v1349, %v1349
      %v1357 = vpack.c.b16 %v1350, %v1350
      %vm1365 = vcmask 125952
      %1366 = vst.msk [vmem:[#allocation2] sm:$0xf] %vm1365, %v1351
      %1367 = vst.msk [vmem:[#allocation2 + $0x4] sm:$0xf] %vm1365, %v1352
      %1368 = vst.msk [vmem:[#allocation2 + $0x8] sm:$0xf] %vm1365, %v1353
      %1369 = vst.msk [vmem:[#allocation2 + $0xc] sm:$0xf] %vm1365, %v1354
      %1370 = vst.msk [vmem:[#allocation2 + $0x10] sm:$0xf] %vm1365, %v1355
      %1371 = vst.msk [vmem:[#allocation2 + $0x14] sm:$0xf] %vm1365, %v1356
      %vm1372 = vcmask 122880
      %1373 = vst.msk [vmem:[#allocation2 + $0x18] sm:$0x1] %vm1372, %v1357
      %v1374 = vld [vmem:[#allocation2] sm:$0xf]
      %v1375 = vld [vmem:[#allocation2 + $0x4] sm:$0xf]
      %v1376 = vld [vmem:[#allocation2 + $0x8] sm:$0xf]
      %v1377 = vld [vmem:[#allocation2 + $0xc] sm:$0xf]
      %v1378 = vld [vmem:[%s4] sm:$0xf]
      %v1379 = vld [vmem:[%s4 + $0x4] sm:$0xf]
      %v1380 = vld [vmem:[#allocation2 + $0x10] sm:$0x1]
      %s1381 = scalar_lea.vmem %s4, 8
      %v1382 = vld [vmem:[%s1381] sm:$0xf]
      %v1383 = vld [vmem:[%s1381 + $0x4] sm:$0xf]
      %v1389 = vunpack.c.l.b16 %v1374
      %v1390 = vunpack.c.l.b16 %v1375
      %v1391 = vunpack.c.l.b16 %v1376
      %v1392 = vunpack.c.l.b16 %v1377
      %v1393 = vunpack.c.l.b16 %v1380
      %v1394 = vpack.c.b16 %v1390, %v1389
      %v1395 = vpack.c.b16 %v1392, %v1391
      %v1396 = vpack.c.b16 %v1393, %v1393
      %v1398 = vshrl.u32 %v1394, 16
      %v1400 = vshll.u32 %v1394, 16
      %v1402 = vrot.slane %v1400, 1
      %v1403 = vor.u32 %v1398, %v1402
      %v1405 = vshll.u32 %v1395, 16
      %v1407 = vrot.slane %v1405, 1
      %v1408 = vsel %vm282, %v1403, %v1407
      %v1409 = vshrl.u32 %v1395, 16
      %v1411 = vor.u32 %v1409, %v1407
      %v1413 = vshll.u32 %v1396, 16
      %v1415 = vrot.slane %v1413, 1
      %v1416 = vsel %vm282, %v1411, %v1415
      %v1419 = vunpack.c.l.b16 %v1382
      %v1420 = vunpack.c.l.b16 %v1383
      %v1421 = vpack.c.b16 %v1420, %v1419
      %vm1423 = vcmask 130048
      %v1425 = vsel %vm1423, %v1408, 0
      %v1428 = vsel %vm1423, %v1416, 0
      %1430 = vmatprep.subr.bf16.mxu0 0
      %1431 = vmatpush1.bf16.msra.mxu0 0
      %1432 = vmatprep.subr.bf16.mxu0 0
      %1433 = vmatpush1.bf16.msra.mxu0 0
      %1434 = vmatprep.subr.bf16.mxu0 0
      %1435 = vmatpush1.bf16.msra.mxu0 0
      %1436 = vmatprep.subr.bf16.mxu0 0
      %1437 = vmatpush1.bf16.msra.mxu0 0
      %1438 = vmatprep.subr.bf16.mxu0 0
      %1439 = vmatpush1.bf16.msra.mxu0 0
      %1440 = vmatprep.subr.bf16.mxu0 0
      %1441 = vmatpush1.bf16.msra.mxu0 0
      %1442 = vmatprep.subr.bf16.mxu0 0
      %1443 = vmatpush1.bf16.msra.mxu0 0
      %1444 = vmatprep.subr.bf16.mxu0 0
      %1445 = vmatpush1.bf16.msra.mxu0 %v1421
      %1446 = vmatprep.subr.bf16.mxu0 0
      %1447 = vmatpush2.bf16.msra.mxu0 0
      %1448 = vmatprep.subr.bf16.mxu0 0
      %1449 = vmatpush2.bf16.msra.mxu0 0
      %1450 = vmatprep.subr.bf16.mxu0 0
      %1451 = vmatpush2.bf16.msra.mxu0 0
      %1452 = vmatprep.subr.bf16.mxu0 0
      %1453 = vmatpush2.bf16.msra.mxu0 0
      %1454 = vmatprep.subr.bf16.mxu0 0
      %1455 = vmatpush2.bf16.msra.mxu0 0
      %1456 = vmatprep.subr.bf16.mxu0 0
      %1457 = vmatpush2.bf16.msra.mxu0 0
      %1458 = vmatprep.subr.bf16.mxu0 0
      %1459 = vmatpush2.bf16.msra.mxu0 0
      %1460 = vmatprep.subr.bf16.mxu0 0
      %1461 = vmatpush2.bf16.msra.mxu0 0
      %1462 = vmatprep.mubr.bf16.mxu0 0
      %1463 = vmatmul.mubr.bf16.gmra.mxu0 %v1425
      %v1464 = vpop.f32.mrf.mxu0
      %v1465 = vadd.f32 0.0, %v1464
      %v1466 = vpop.f32.mrf.mxu0
      %v1467 = vpop.f32.mrf.mxu0
      %v1468 = vadd.f32 0.0, %v1467
      %v1469 = vpop.f32.mrf.mxu0
      %1470 = vmatprep.mubr.bf16.mxu0 0
      %1471 = vmatmul.mubr.bf16.gmra.mxu0 %v1428
      %v1472 = vpop.f32.mrf.mxu0
      %v1473 = vadd.f32 0.0, %v1472
      %v1474 = vpop.f32.mrf.mxu0
      %v1475 = vpop.f32.mrf.mxu0
      %v1476 = vadd.f32 0.0, %v1475
      %v1477 = vpop.f32.mrf.mxu0
      %1478 = vdwg.mxu0
      %v1481 = vunpack.c.l.b16 %v1378
      %v1482 = vunpack.c.l.b16 %v1379
      %v1483 = vpack.c.b16 %v1482, %v1481
      %v1485 = vsel %vm1423, %v1394, 0
      %v1487 = vsel %vm1423, %v1395, 0
      %1489 = vmatprep.subr.bf16.mxu0 0
      %1490 = vmatpush1.bf16.msra.mxu0 0
      %1491 = vmatprep.subr.bf16.mxu0 0
      %1492 = vmatpush1.bf16.msra.mxu0 0
      %1493 = vmatprep.subr.bf16.mxu0 0
      %1494 = vmatpush1.bf16.msra.mxu0 0
      %1495 = vmatprep.subr.bf16.mxu0 0
      %1496 = vmatpush1.bf16.msra.mxu0 0
      %1497 = vmatprep.subr.bf16.mxu0 0
      %1498 = vmatpush1.bf16.msra.mxu0 0
      %1499 = vmatprep.subr.bf16.mxu0 0
      %1500 = vmatpush1.bf16.msra.mxu0 0
      %1501 = vmatprep.subr.bf16.mxu0 0
      %1502 = vmatpush1.bf16.msra.mxu0 0
      %1503 = vmatprep.subr.bf16.mxu0 0
      %1504 = vmatpush1.bf16.msra.mxu0 %v1483
      %1505 = vmatprep.subr.bf16.mxu0 0
      %1506 = vmatpush2.bf16.msra.mxu0 0
      %1507 = vmatprep.subr.bf16.mxu0 0
      %1508 = vmatpush2.bf16.msra.mxu0 0
      %1509 = vmatprep.subr.bf16.mxu0 0
      %1510 = vmatpush2.bf16.msra.mxu0 0
      %1511 = vmatprep.subr.bf16.mxu0 0
      %1512 = vmatpush2.bf16.msra.mxu0 0
      %1513 = vmatprep.subr.bf16.mxu0 0
      %1514 = vmatpush2.bf16.msra.mxu0 0
      %1515 = vmatprep.subr.bf16.mxu0 0
      %1516 = vmatpush2.bf16.msra.mxu0 0
      %1517 = vmatprep.subr.bf16.mxu0 0
      %1518 = vmatpush2.bf16.msra.mxu0 0
      %1519 = vmatprep.subr.bf16.mxu0 0
      %1520 = vmatpush2.bf16.msra.mxu0 0
      %1521 = vmatprep.mubr.bf16.mxu0 0
      %1522 = vmatmul.mubr.bf16.gmra.mxu0 %v1485
      %v1523 = vpop.f32.mrf.mxu0
      %v1524 = vadd.f32 %v1465, %v1523
      %v1525 = vpop.f32.mrf.mxu0
      %v1526 = vpop.f32.mrf.mxu0
      %v1527 = vadd.f32 %v1468, %v1526
      %v1528 = vpop.f32.mrf.mxu0
      %1529 = vmatprep.mubr.bf16.mxu0 0
      %1530 = vmatmul.mubr.bf16.gmra.mxu0 %v1487
      %v1531 = vpop.f32.mrf.mxu0
      %v1532 = vadd.f32 %v1473, %v1531
      %v1533 = vpop.f32.mrf.mxu0
      %v1534 = vpop.f32.mrf.mxu0
      %v1535 = vadd.f32 %v1476, %v1534
      %v1536 = vpop.f32.mrf.mxu0
      %1537 = vdwg.mxu0
      %v1538 = vld [vmem:[#allocation2] sm:$0xe]
      %s1539 = scalar_lea.vmem %s4, 16
      %v1540 = vld [vmem:[%s1539] sm:$0xf]
      %v1541 = vld [vmem:[%s1539 + $0x4] sm:$0xf]
      %v1543 = vunpack.c.l.b16 %v1538
      %v1544 = vpack.c.b16 %v1390, %v1543
      %v1545 = vrot.slane %v1544, 1
      %v1546 = vrot.slane %v1395, 1
      %v1547 = vsel %vm480, %v1545, %v1546
      %v1548 = vrot.slane %v1396, 1
      %v1549 = vsel %vm480, %v1546, %v1548
      %v1552 = vunpack.c.l.b16 %v1540
      %v1553 = vunpack.c.l.b16 %v1541
      %v1554 = vpack.c.b16 %v1553, %v1552
      %v1557 = vsel %vm1423, %v1547, 0
      %v1560 = vsel %vm1423, %v1549, 0
      %1562 = vmatprep.subr.bf16.mxu0 0
      %1563 = vmatpush1.bf16.msra.mxu0 0
      %1564 = vmatprep.subr.bf16.mxu0 0
      %1565 = vmatpush1.bf16.msra.mxu0 0
      %1566 = vmatprep.subr.bf16.mxu0 0
      %1567 = vmatpush1.bf16.msra.mxu0 0
      %1568 = vmatprep.subr.bf16.mxu0 0
      %1569 = vmatpush1.bf16.msra.mxu0 0
      %1570 = vmatprep.subr.bf16.mxu0 0
      %1571 = vmatpush1.bf16.msra.mxu0 0
      %1572 = vmatprep.subr.bf16.mxu0 0
      %1573 = vmatpush1.bf16.msra.mxu0 0
      %1574 = vmatprep.subr.bf16.mxu0 0
      %1575 = vmatpush1.bf16.msra.mxu0 0
      %1576 = vmatprep.subr.bf16.mxu0 0
      %1577 = vmatpush1.bf16.msra.mxu0 %v1554
      %1578 = vmatprep.subr.bf16.mxu0 0
      %1579 = vmatpush2.bf16.msra.mxu0 0
      %1580 = vmatprep.subr.bf16.mxu0 0
      %1581 = vmatpush2.bf16.msra.mxu0 0
      %1582 = vmatprep.subr.bf16.mxu0 0
      %1583 = vmatpush2.bf16.msra.mxu0 0
      %1584 = vmatprep.subr.bf16.mxu0 0
      %1585 = vmatpush2.bf16.msra.mxu0 0
      %1586 = vmatprep.subr.bf16.mxu0 0
      %1587 = vmatpush2.bf16.msra.mxu0 0
      %1588 = vmatprep.subr.bf16.mxu0 0
      %1589 = vmatpush2.bf16.msra.mxu0 0
      %1590 = vmatprep.subr.bf16.mxu0 0
      %1591 = vmatpush2.bf16.msra.mxu0 0
      %1592 = vmatprep.subr.bf16.mxu0 0
      %1593 = vmatpush2.bf16.msra.mxu0 0
      %1594 = vmatprep.mubr.bf16.mxu0 0
      %1595 = vmatmul.mubr.bf16.gmra.mxu0 %v1557
      %v1596 = vpop.f32.mrf.mxu0
      %v1597 = vadd.f32 0.0, %v1596
      %v1598 = vpop.f32.mrf.mxu0
      %v1599 = vpop.f32.mrf.mxu0
      %v1600 = vadd.f32 0.0, %v1599
      %v1601 = vpop.f32.mrf.mxu0
      %1602 = vmatprep.mubr.bf16.mxu0 0
      %1603 = vmatmul.mubr.bf16.gmra.mxu0 %v1560
      %v1604 = vpop.f32.mrf.mxu0
      %v1605 = vadd.f32 0.0, %v1604
      %v1606 = vpop.f32.mrf.mxu0
      %v1607 = vpop.f32.mrf.mxu0
      %v1608 = vadd.f32 0.0, %v1607
      %v1609 = vpop.f32.mrf.mxu0
      %1610 = vdwg.mxu0
      %v1611 = vadd.f32 %v1524, %v1597
      %v1612 = vadd.f32 %v1527, %v1600
      %v1613 = vadd.f32 %v1532, %v1605
      %v1614 = vadd.f32 %v1535, %v1608
      %v1615 = vld [vmem:[#allocation2 + $0x10] sm:$0xf]
      %s1616 = scalar_lea.vmem %s4, 24
      %v1617 = vld [vmem:[%s1616] sm:$0xf]
      %v1618 = vld [vmem:[%s1616 + $0x4] sm:$0xf]
      %v1620 = vunpack.c.l.b16 %v1615
      %v1621 = vpack.c.b16 %v1391, %v1390
      %v1622 = vpack.c.b16 %v1620, %v1392
      %v1625 = vunpack.c.l.b16 %v1617
      %v1626 = vunpack.c.l.b16 %v1618
      %v1627 = vpack.c.b16 %v1626, %v1625
      %v1630 = vsel %vm1423, %v1621, 0
      %v1633 = vsel %vm1423, %v1622, 0
      %1635 = vmatprep.subr.bf16.mxu0 0
      %1636 = vmatpush1.bf16.msra.mxu0 0
      %1637 = vmatprep.subr.bf16.mxu0 0
      %1638 = vmatpush1.bf16.msra.mxu0 0
      %1639 = vmatprep.subr.bf16.mxu0 0
      %1640 = vmatpush1.bf16.msra.mxu0 0
      %1641 = vmatprep.subr.bf16.mxu0 0
      %1642 = vmatpush1.bf16.msra.mxu0 0
      %1643 = vmatprep.subr.bf16.mxu0 0
      %1644 = vmatpush1.bf16.msra.mxu0 0
      %1645 = vmatprep.subr.bf16.mxu0 0
      %1646 = vmatpush1.bf16.msra.mxu0 0
      %1647 = vmatprep.subr.bf16.mxu0 0
      %1648 = vmatpush1.bf16.msra.mxu0 0
      %1649 = vmatprep.subr.bf16.mxu0 0
      %1650 = vmatpush1.bf16.msra.mxu0 %v1627
      %1651 = vmatprep.subr.bf16.mxu0 0
      %1652 = vmatpush2.bf16.msra.mxu0 0
      %1653 = vmatprep.subr.bf16.mxu0 0
      %1654 = vmatpush2.bf16.msra.mxu0 0
      %1655 = vmatprep.subr.bf16.mxu0 0
      %1656 = vmatpush2.bf16.msra.mxu0 0
      %1657 = vmatprep.subr.bf16.mxu0 0
      %1658 = vmatpush2.bf16.msra.mxu0 0
      %1659 = vmatprep.subr.bf16.mxu0 0
      %1660 = vmatpush2.bf16.msra.mxu0 0
      %1661 = vmatprep.subr.bf16.mxu0 0
      %1662 = vmatpush2.bf16.msra.mxu0 0
      %1663 = vmatprep.subr.bf16.mxu0 0
      %1664 = vmatpush2.bf16.msra.mxu0 0
      %1665 = vmatprep.subr.bf16.mxu0 0
      %1666 = vmatpush2.bf16.msra.mxu0 0
      %1667 = vmatprep.mubr.bf16.mxu0 0
      %1668 = vmatmul.mubr.bf16.gmra.mxu0 %v1630
      %v1669 = vpop.f32.mrf.mxu0
      %v1670 = vadd.f32 0.0, %v1669
      %v1671 = vpop.f32.mrf.mxu0
      %v1672 = vpop.f32.mrf.mxu0
      %v1673 = vadd.f32 0.0, %v1672
      %v1674 = vpop.f32.mrf.mxu0
      %1675 = vmatprep.mubr.bf16.mxu0 0
      %1676 = vmatmul.mubr.bf16.gmra.mxu0 %v1633
      %v1677 = vpop.f32.mrf.mxu0
      %v1678 = vadd.f32 0.0, %v1677
      %v1679 = vpop.f32.mrf.mxu0
      %v1680 = vpop.f32.mrf.mxu0
      %v1681 = vadd.f32 0.0, %v1680
      %v1682 = vpop.f32.mrf.mxu0
      %1683 = vdwg.mxu0
      %v1684 = vadd.f32 %v1611, %v1670
      %v1685 = vadd.f32 %v1612, %v1673
      %v1686 = vadd.f32 %v1613, %v1678
      %v1687 = vadd.f32 %v1614, %v1681
      %v1688 = vld [vmem:[#allocation2 + $0x4] sm:$0xf]
      %v1689 = vld [vmem:[#allocation2 + $0x8] sm:$0xf]
      %v1690 = vld [vmem:[#allocation2 + $0xc] sm:$0xf]
      %v1691 = vld [vmem:[#allocation2 + $0x10] sm:$0xf]
      %v1692 = vld [vmem:[#allocation2 + $0x14] sm:$0x1]
      %s1693 = scalar_lea.vmem %s4, 32
      %v1694 = vld [vmem:[%s1693] sm:$0xf]
      %v1695 = vld [vmem:[%s1693 + $0x4] sm:$0xf]
      %v1701 = vunpack.c.l.b16 %v1688
      %v1702 = vunpack.c.l.b16 %v1689
      %v1703 = vunpack.c.l.b16 %v1690
      %v1704 = vunpack.c.l.b16 %v1691
      %v1705 = vunpack.c.l.b16 %v1692
      %v1706 = vpack.c.b16 %v1702, %v1701
      %v1707 = vpack.c.b16 %v1704, %v1703
      %v1708 = vpack.c.b16 %v1705, %v1705
      %v1710 = vshrl.u32 %v1706, 16
      %v1712 = vshll.u32 %v1706, 16
      %v1714 = vrot.slane %v1712, 1
      %v1715 = vor.u32 %v1710, %v1714
      %v1717 = vshll.u32 %v1707, 16
      %v1719 = vrot.slane %v1717, 1
      %v1720 = vsel %vm282, %v1715, %v1719
      %v1721 = vshrl.u32 %v1707, 16
      %v1723 = vor.u32 %v1721, %v1719
      %v1725 = vshll.u32 %v1708, 16
      %v1727 = vrot.slane %v1725, 1
      %v1728 = vsel %vm282, %v1723, %v1727
      %v1731 = vunpack.c.l.b16 %v1694
      %v1732 = vunpack.c.l.b16 %v1695
      %v1733 = vpack.c.b16 %v1732, %v1731
      %v1736 = vsel %vm1423, %v1720, 0
      %v1739 = vsel %vm1423, %v1728, 0
      %1741 = vmatprep.subr.bf16.mxu0 0
      %1742 = vmatpush1.bf16.msra.mxu0 0
      %1743 = vmatprep.subr.bf16.mxu0 0
      %1744 = vmatpush1.bf16.msra.mxu0 0
      %1745 = vmatprep.subr.bf16.mxu0 0
      %1746 = vmatpush1.bf16.msra.mxu0 0
      %1747 = vmatprep.subr.bf16.mxu0 0
      %1748 = vmatpush1.bf16.msra.mxu0 0
      %1749 = vmatprep.subr.bf16.mxu0 0
      %1750 = vmatpush1.bf16.msra.mxu0 0
      %1751 = vmatprep.subr.bf16.mxu0 0
      %1752 = vmatpush1.bf16.msra.mxu0 0
      %1753 = vmatprep.subr.bf16.mxu0 0
      %1754 = vmatpush1.bf16.msra.mxu0 0
      %1755 = vmatprep.subr.bf16.mxu0 0
      %1756 = vmatpush1.bf16.msra.mxu0 %v1733
      %1757 = vmatprep.subr.bf16.mxu0 0
      %1758 = vmatpush2.bf16.msra.mxu0 0
      %1759 = vmatprep.subr.bf16.mxu0 0
      %1760 = vmatpush2.bf16.msra.mxu0 0
      %1761 = vmatprep.subr.bf16.mxu0 0
      %1762 = vmatpush2.bf16.msra.mxu0 0
      %1763 = vmatprep.subr.bf16.mxu0 0
      %1764 = vmatpush2.bf16.msra.mxu0 0
      %1765 = vmatprep.subr.bf16.mxu0 0
      %1766 = vmatpush2.bf16.msra.mxu0 0
      %1767 = vmatprep.subr.bf16.mxu0 0
      %1768 = vmatpush2.bf16.msra.mxu0 0
      %1769 = vmatprep.subr.bf16.mxu0 0
      %1770 = vmatpush2.bf16.msra.mxu0 0
      %1771 = vmatprep.subr.bf16.mxu0 0
      %1772 = vmatpush2.bf16.msra.mxu0 0
      %1773 = vmatprep.mubr.bf16.mxu0 0
      %1774 = vmatmul.mubr.bf16.gmra.mxu0 %v1736
      %v1775 = vpop.f32.mrf.mxu0
      %v1776 = vadd.f32 0.0, %v1775
      %v1777 = vpop.f32.mrf.mxu0
      %v1778 = vpop.f32.mrf.mxu0
      %v1779 = vadd.f32 0.0, %v1778
      %v1780 = vpop.f32.mrf.mxu0
      %1781 = vmatprep.mubr.bf16.mxu0 0
      %1782 = vmatmul.mubr.bf16.gmra.mxu0 %v1739
      %v1783 = vpop.f32.mrf.mxu0
      %v1784 = vadd.f32 0.0, %v1783
      %v1785 = vpop.f32.mrf.mxu0
      %v1786 = vpop.f32.mrf.mxu0
      %v1787 = vadd.f32 0.0, %v1786
      %v1788 = vpop.f32.mrf.mxu0
      %1789 = vdwg.mxu0
      %v1790 = vadd.f32 %v1684, %v1776
      %v1791 = vadd.f32 %v1685, %v1779
      %v1792 = vadd.f32 %v1686, %v1784
      %v1793 = vadd.f32 %v1687, %v1787
      %v1794 = vld [vmem:[#allocation2 + $0x4] sm:$0xe]
      %s1795 = scalar_lea.vmem %s4, 40
      %v1796 = vld [vmem:[%s1795] sm:$0xf]
      %v1797 = vld [vmem:[%s1795 + $0x4] sm:$0xf]
      %v1799 = vunpack.c.l.b16 %v1794
      %v1800 = vpack.c.b16 %v1702, %v1799
      %v1801 = vrot.slane %v1800, 1
      %v1802 = vrot.slane %v1707, 1
      %v1803 = vsel %vm480, %v1801, %v1802
      %v1804 = vrot.slane %v1708, 1
      %v1805 = vsel %vm480, %v1802, %v1804
      %v1808 = vunpack.c.l.b16 %v1796
      %v1809 = vunpack.c.l.b16 %v1797
      %v1810 = vpack.c.b16 %v1809, %v1808
      %v1813 = vsel %vm1423, %v1803, 0
      %v1816 = vsel %vm1423, %v1805, 0
      %1818 = vmatprep.subr.bf16.mxu0 0
      %1819 = vmatpush1.bf16.msra.mxu0 0
      %1820 = vmatprep.subr.bf16.mxu0 0
      %1821 = vmatpush1.bf16.msra.mxu0 0
      %1822 = vmatprep.subr.bf16.mxu0 0
      %1823 = vmatpush1.bf16.msra.mxu0 0
      %1824 = vmatprep.subr.bf16.mxu0 0
      %1825 = vmatpush1.bf16.msra.mxu0 0
      %1826 = vmatprep.subr.bf16.mxu0 0
      %1827 = vmatpush1.bf16.msra.mxu0 0
      %1828 = vmatprep.subr.bf16.mxu0 0
      %1829 = vmatpush1.bf16.msra.mxu0 0
      %1830 = vmatprep.subr.bf16.mxu0 0
      %1831 = vmatpush1.bf16.msra.mxu0 0
      %1832 = vmatprep.subr.bf16.mxu0 0
      %1833 = vmatpush1.bf16.msra.mxu0 %v1810
      %1834 = vmatprep.subr.bf16.mxu0 0
      %1835 = vmatpush2.bf16.msra.mxu0 0
      %1836 = vmatprep.subr.bf16.mxu0 0
      %1837 = vmatpush2.bf16.msra.mxu0 0
      %1838 = vmatprep.subr.bf16.mxu0 0
      %1839 = vmatpush2.bf16.msra.mxu0 0
      %1840 = vmatprep.subr.bf16.mxu0 0
      %1841 = vmatpush2.bf16.msra.mxu0 0
      %1842 = vmatprep.subr.bf16.mxu0 0
      %1843 = vmatpush2.bf16.msra.mxu0 0
      %1844 = vmatprep.subr.bf16.mxu0 0
      %1845 = vmatpush2.bf16.msra.mxu0 0
      %1846 = vmatprep.subr.bf16.mxu0 0
      %1847 = vmatpush2.bf16.msra.mxu0 0
      %1848 = vmatprep.subr.bf16.mxu0 0
      %1849 = vmatpush2.bf16.msra.mxu0 0
      %1850 = vmatprep.mubr.bf16.mxu0 0
      %1851 = vmatmul.mubr.bf16.gmra.mxu0 %v1813
      %v1852 = vpop.f32.mrf.mxu0
      %v1853 = vadd.f32 0.0, %v1852
      %v1854 = vpop.f32.mrf.mxu0
      %v1855 = vpop.f32.mrf.mxu0
      %v1856 = vadd.f32 0.0, %v1855
      %v1857 = vpop.f32.mrf.mxu0
      %1858 = vmatprep.mubr.bf16.mxu0 0
      %1859 = vmatmul.mubr.bf16.gmra.mxu0 %v1816
      %v1860 = vpop.f32.mrf.mxu0
      %v1861 = vadd.f32 0.0, %v1860
      %v1862 = vpop.f32.mrf.mxu0
      %v1863 = vpop.f32.mrf.mxu0
      %v1864 = vadd.f32 0.0, %v1863
      %v1865 = vpop.f32.mrf.mxu0
      %1866 = vdwg.mxu0
      %v1867 = vadd.f32 %v1790, %v1853
      %v1868 = vadd.f32 %v1791, %v1856
      %v1869 = vadd.f32 %v1792, %v1861
      %v1870 = vadd.f32 %v1793, %v1864
      %v1871 = vld [vmem:[#allocation2 + $0x14] sm:$0xf]
      %s1872 = scalar_lea.vmem %s4, 48
      %v1873 = vld [vmem:[%s1872] sm:$0xf]
      %v1874 = vld [vmem:[%s1872 + $0x4] sm:$0xf]
      %v1876 = vunpack.c.l.b16 %v1871
      %v1877 = vpack.c.b16 %v1703, %v1702
      %v1878 = vpack.c.b16 %v1876, %v1704
      %v1881 = vunpack.c.l.b16 %v1873
      %v1882 = vunpack.c.l.b16 %v1874
      %v1883 = vpack.c.b16 %v1882, %v1881
      %v1886 = vsel %vm1423, %v1877, 0
      %v1889 = vsel %vm1423, %v1878, 0
      %1891 = vmatprep.subr.bf16.mxu0 0
      %1892 = vmatpush1.bf16.msra.mxu0 0
      %1893 = vmatprep.subr.bf16.mxu0 0
      %1894 = vmatpush1.bf16.msra.mxu0 0
      %1895 = vmatprep.subr.bf16.mxu0 0
      %1896 = vmatpush1.bf16.msra.mxu0 0
      %1897 = vmatprep.subr.bf16.mxu0 0
      %1898 = vmatpush1.bf16.msra.mxu0 0
      %1899 = vmatprep.subr.bf16.mxu0 0
      %1900 = vmatpush1.bf16.msra.mxu0 0
      %1901 = vmatprep.subr.bf16.mxu0 0
      %1902 = vmatpush1.bf16.msra.mxu0 0
      %1903 = vmatprep.subr.bf16.mxu0 0
      %1904 = vmatpush1.bf16.msra.mxu0 0
      %1905 = vmatprep.subr.bf16.mxu0 0
      %1906 = vmatpush1.bf16.msra.mxu0 %v1883
      %1907 = vmatprep.subr.bf16.mxu0 0
      %1908 = vmatpush2.bf16.msra.mxu0 0
      %1909 = vmatprep.subr.bf16.mxu0 0
      %1910 = vmatpush2.bf16.msra.mxu0 0
      %1911 = vmatprep.subr.bf16.mxu0 0
      %1912 = vmatpush2.bf16.msra.mxu0 0
      %1913 = vmatprep.subr.bf16.mxu0 0
      %1914 = vmatpush2.bf16.msra.mxu0 0
      %1915 = vmatprep.subr.bf16.mxu0 0
      %1916 = vmatpush2.bf16.msra.mxu0 0
      %1917 = vmatprep.subr.bf16.mxu0 0
      %1918 = vmatpush2.bf16.msra.mxu0 0
      %1919 = vmatprep.subr.bf16.mxu0 0
      %1920 = vmatpush2.bf16.msra.mxu0 0
      %1921 = vmatprep.subr.bf16.mxu0 0
      %1922 = vmatpush2.bf16.msra.mxu0 0
      %1923 = vmatprep.mubr.bf16.mxu0 0
      %1924 = vmatmul.mubr.bf16.gmra.mxu0 %v1886
      %v1925 = vpop.f32.mrf.mxu0
      %v1926 = vadd.f32 0.0, %v1925
      %v1927 = vpop.f32.mrf.mxu0
      %v1928 = vpop.f32.mrf.mxu0
      %v1929 = vadd.f32 0.0, %v1928
      %v1930 = vpop.f32.mrf.mxu0
      %1931 = vmatprep.mubr.bf16.mxu0 0
      %1932 = vmatmul.mubr.bf16.gmra.mxu0 %v1889
      %v1933 = vpop.f32.mrf.mxu0
      %v1934 = vadd.f32 0.0, %v1933
      %v1935 = vpop.f32.mrf.mxu0
      %v1936 = vpop.f32.mrf.mxu0
      %v1937 = vadd.f32 0.0, %v1936
      %v1938 = vpop.f32.mrf.mxu0
      %1939 = vdwg.mxu0
      %v1940 = vadd.f32 %v1867, %v1926
      %v1941 = vadd.f32 %v1868, %v1929
      %v1942 = vadd.f32 %v1869, %v1934
      %v1943 = vadd.f32 %v1870, %v1937
      %v1944 = vld [vmem:[#allocation2 + $0x8] sm:$0xf]
      %v1945 = vld [vmem:[#allocation2 + $0xc] sm:$0xf]
      %v1946 = vld [vmem:[#allocation2 + $0x10] sm:$0xf]
      %v1947 = vld [vmem:[#allocation2 + $0x14] sm:$0xf]
      %v1948 = vld [vmem:[#allocation2 + $0x18] sm:$0x1]
      %s1949 = scalar_lea.vmem %s4, 56
      %v1950 = vld [vmem:[%s1949] sm:$0xf]
      %v1951 = vld [vmem:[%s1949 + $0x4] sm:$0xf]
      %v1957 = vunpack.c.l.b16 %v1944
      %v1958 = vunpack.c.l.b16 %v1945
      %v1959 = vunpack.c.l.b16 %v1946
      %v1960 = vunpack.c.l.b16 %v1947
      %v1961 = vunpack.c.l.b16 %v1948
      %v1962 = vpack.c.b16 %v1958, %v1957
      %v1963 = vpack.c.b16 %v1960, %v1959
      %v1964 = vpack.c.b16 %v1961, %v1961
      %v1966 = vshrl.u32 %v1962, 16
      %v1968 = vshll.u32 %v1962, 16
      %v1970 = vrot.slane %v1968, 1
      %v1971 = vor.u32 %v1966, %v1970
      %v1973 = vshll.u32 %v1963, 16
      %v1975 = vrot.slane %v1973, 1
      %v1976 = vsel %vm282, %v1971, %v1975
      %v1977 = vshrl.u32 %v1963, 16
      %v1979 = vor.u32 %v1977, %v1975
      %v1981 = vshll.u32 %v1964, 16
      %v1983 = vrot.slane %v1981, 1
      %v1984 = vsel %vm282, %v1979, %v1983
      %v1987 = vunpack.c.l.b16 %v1950
      %v1988 = vunpack.c.l.b16 %v1951
      %v1989 = vpack.c.b16 %v1988, %v1987
      %v1992 = vsel %vm1423, %v1976, 0
      %v1995 = vsel %vm1423, %v1984, 0
      %1997 = vmatprep.subr.bf16.mxu0 0
      %1998 = vmatpush1.bf16.msra.mxu0 0
      %1999 = vmatprep.subr.bf16.mxu0 0
      %2000 = vmatpush1.bf16.msra.mxu0 0
      %2001 = vmatprep.subr.bf16.mxu0 0
      %2002 = vmatpush1.bf16.msra.mxu0 0
      %2003 = vmatprep.subr.bf16.mxu0 0
      %2004 = vmatpush1.bf16.msra.mxu0 0
      %2005 = vmatprep.subr.bf16.mxu0 0
      %2006 = vmatpush1.bf16.msra.mxu0 0
      %2007 = vmatprep.subr.bf16.mxu0 0
      %2008 = vmatpush1.bf16.msra.mxu0 0
      %2009 = vmatprep.subr.bf16.mxu0 0
      %2010 = vmatpush1.bf16.msra.mxu0 0
      %2011 = vmatprep.subr.bf16.mxu0 0
      %2012 = vmatpush1.bf16.msra.mxu0 %v1989
      %2013 = vmatprep.subr.bf16.mxu0 0
      %2014 = vmatpush2.bf16.msra.mxu0 0
      %2015 = vmatprep.subr.bf16.mxu0 0
      %2016 = vmatpush2.bf16.msra.mxu0 0
      %2017 = vmatprep.subr.bf16.mxu0 0
      %2018 = vmatpush2.bf16.msra.mxu0 0
      %2019 = vmatprep.subr.bf16.mxu0 0
      %2020 = vmatpush2.bf16.msra.mxu0 0
      %2021 = vmatprep.subr.bf16.mxu0 0
      %2022 = vmatpush2.bf16.msra.mxu0 0
      %2023 = vmatprep.subr.bf16.mxu0 0
      %2024 = vmatpush2.bf16.msra.mxu0 0
      %2025 = vmatprep.subr.bf16.mxu0 0
      %2026 = vmatpush2.bf16.msra.mxu0 0
      %2027 = vmatprep.subr.bf16.mxu0 0
      %2028 = vmatpush2.bf16.msra.mxu0 0
      %2029 = vmatprep.mubr.bf16.mxu0 0
      %2030 = vmatmul.mubr.bf16.gmra.mxu0 %v1992
      %v2031 = vpop.f32.mrf.mxu0
      %v2032 = vadd.f32 0.0, %v2031
      %v2033 = vpop.f32.mrf.mxu0
      %v2034 = vpop.f32.mrf.mxu0
      %v2035 = vadd.f32 0.0, %v2034
      %v2036 = vpop.f32.mrf.mxu0
      %2037 = vmatprep.mubr.bf16.mxu0 0
      %2038 = vmatmul.mubr.bf16.gmra.mxu0 %v1995
      %v2039 = vpop.f32.mrf.mxu0
      %v2040 = vadd.f32 0.0, %v2039
      %v2041 = vpop.f32.mrf.mxu0
      %v2042 = vpop.f32.mrf.mxu0
      %v2043 = vadd.f32 0.0, %v2042
      %v2044 = vpop.f32.mrf.mxu0
      %2045 = vdwg.mxu0
      %v2046 = vadd.f32 %v1940, %v2032
      %v2047 = vadd.f32 %v1941, %v2035
      %v2048 = vadd.f32 %v1942, %v2040
      %v2049 = vadd.f32 %v1943, %v2043
      %v2050 = vld [vmem:[#allocation2 + $0x8] sm:$0xe]
      %s2051 = scalar_lea.vmem %s4, 64
      %v2052 = vld [vmem:[%s2051] sm:$0xf]
      %v2053 = vld [vmem:[%s2051 + $0x4] sm:$0xf]
      %v2055 = vunpack.c.l.b16 %v2050
      %v2056 = vpack.c.b16 %v1958, %v2055
      %v2057 = vrot.slane %v2056, 1
      %v2058 = vrot.slane %v1963, 1
      %v2059 = vsel %vm480, %v2057, %v2058
      %v2060 = vrot.slane %v1964, 1
      %v2061 = vsel %vm480, %v2058, %v2060
      %v2064 = vunpack.c.l.b16 %v2052
      %v2065 = vunpack.c.l.b16 %v2053
      %v2066 = vpack.c.b16 %v2065, %v2064
      %v2069 = vsel %vm1423, %v2059, 0
      %v2072 = vsel %vm1423, %v2061, 0
      %2074 = vmatprep.subr.bf16.mxu0 0
      %2075 = vmatpush1.bf16.msra.mxu0 0
      %2076 = vmatprep.subr.bf16.mxu0 0
      %2077 = vmatpush1.bf16.msra.mxu0 0
      %2078 = vmatprep.subr.bf16.mxu0 0
      %2079 = vmatpush1.bf16.msra.mxu0 0
      %2080 = vmatprep.subr.bf16.mxu0 0
      %2081 = vmatpush1.bf16.msra.mxu0 0
      %2082 = vmatprep.subr.bf16.mxu0 0
      %2083 = vmatpush1.bf16.msra.mxu0 0
      %2084 = vmatprep.subr.bf16.mxu0 0
      %2085 = vmatpush1.bf16.msra.mxu0 0
      %2086 = vmatprep.subr.bf16.mxu0 0
      %2087 = vmatpush1.bf16.msra.mxu0 0
      %2088 = vmatprep.subr.bf16.mxu0 0
      %2089 = vmatpush1.bf16.msra.mxu0 %v2066
      %2090 = vmatprep.subr.bf16.mxu0 0
      %2091 = vmatpush2.bf16.msra.mxu0 0
      %2092 = vmatprep.subr.bf16.mxu0 0
      %2093 = vmatpush2.bf16.msra.mxu0 0
      %2094 = vmatprep.subr.bf16.mxu0 0
      %2095 = vmatpush2.bf16.msra.mxu0 0
      %2096 = vmatprep.subr.bf16.mxu0 0
      %2097 = vmatpush2.bf16.msra.mxu0 0
      %2098 = vmatprep.subr.bf16.mxu0 0
      %2099 = vmatpush2.bf16.msra.mxu0 0
      %2100 = vmatprep.subr.bf16.mxu0 0
      %2101 = vmatpush2.bf16.msra.mxu0 0
      %2102 = vmatprep.subr.bf16.mxu0 0
      %2103 = vmatpush2.bf16.msra.mxu0 0
      %2104 = vmatprep.subr.bf16.mxu0 0
      %2105 = vmatpush2.bf16.msra.mxu0 0
      %2106 = vmatprep.mubr.bf16.mxu0 0
      %2107 = vmatmul.mubr.bf16.gmra.mxu0 %v2069
      %v2108 = vpop.f32.mrf.mxu0
      %v2109 = vadd.f32 0.0, %v2108
      %v2110 = vpop.f32.mrf.mxu0
      %v2111 = vpop.f32.mrf.mxu0
      %v2112 = vadd.f32 0.0, %v2111
      %v2113 = vpop.f32.mrf.mxu0
      %2114 = vmatprep.mubr.bf16.mxu0 0
      %2115 = vmatmul.mubr.bf16.gmra.mxu0 %v2072
      %v2116 = vpop.f32.mrf.mxu0
      %v2117 = vadd.f32 0.0, %v2116
      %v2118 = vpop.f32.mrf.mxu0
      %v2119 = vpop.f32.mrf.mxu0
      %v2120 = vadd.f32 0.0, %v2119
      %v2121 = vpop.f32.mrf.mxu0
      %2122 = vdwg.mxu0
      %v2123 = vadd.f32 %v2046, %v2109
      %v2124 = vadd.f32 %v2047, %v2112
      %v2125 = vadd.f32 %v2048, %v2117
      %v2126 = vadd.f32 %v2049, %v2120
      %v2127 = vld [vmem:[%s5] sm:$0x1]
      %v2129 = vlaneseq
      %v2130 = vshrl.u32 %v2129, 7
      %v2131 = vsub.s32 0, %v2130
      %v2132 = vrot.slane %v2127, %v2131
      %v2134 = vadd.f32 %v2123, %v2132
      %v2135 = vadd.f32 %v2124, %v2132
      %v2136 = vadd.f32 %v2125, %v2132
      %v2137 = vadd.f32 %v2126, %v2132
      %2138 = vst.msk [vmem:[%s251] sm:$0xff] %vm314, %v2134
      %2139 = vst.msk [vmem:[%s251 + $0x8] sm:$0xff] %vm314, %v2135
      %2140 = vst.msk [vmem:[%s251 + $0x10] sm:$0xff] %vm314, %v2136
      %2141 = vst.msk [vmem:[%s251 + $0x18] sm:$0xff] %vm314, %v2137
      %p2142 = scmp.lt.s32.totalorder %s17, 1
      %s2143 = scalar_select %p2142, %s17, 1
      %s2144 = smul.addr %s2143, 4
      %s2145 = smul.addr %s2144, 8
      %s2146 = scalar_lea.vmem %s6, %s2145
      // Predicated region
      $region45: #{tpu_custom_call.1} parent=43 // pred_check
        %p2147 = pneg %p166
      $region46: #{tpu_custom_call.1} parent=43 // pred_check_branch
        %2149 = sbr.rel (%p2147) target = $region48
      $region47: #{tpu_custom_call.1} parent=43 // pred_region
        _
      $region48: #{tpu_custom_call.1} parent=43 // pred_fallthru
        _
    $region44: #{tpu_custom_call.1} parent=5 // pred_fallthru
      _
    %p2150 = scmp.le.s32.totalorder 2, %s12
    // Predicated region
    $region49: #{tpu_custom_call.1} parent=5 // pred_check
      %p2151 = pneg %p2150
    $region50: #{tpu_custom_call.1} parent=5 // pred_check_branch
      %2153 = sbr.rel (%p2151) target = $region52
    $region51: #{tpu_custom_call.1} parent=5 // pred_region
      %s2154 = ssub.s32 %s12, 2
      // Predicated region
      $region53: #{tpu_custom_call.1} parent=51 // pred_check
        %p2155 = pneg %p172
      $region54: #{tpu_custom_call.1} parent=51 // pred_check_branch
        %2157 = sbr.rel (%p2155) target = $region56
      $region55: #{tpu_custom_call.1} parent=51 // pred_region
        %p2158 = scmp.lt.s32.totalorder %s18, 1
        %s2159 = scalar_select %p2158, %s18, 1
        %s2160 = smul.addr %s2159, 4
        %s2161 = smul.addr %s2160, 8
        %s2162 = scalar_lea.vmem %s6, %s2161
      $region56: #{tpu_custom_call.1} parent=51 // pred_fallthru
        _
    $region52: #{tpu_custom_call.1} parent=5 // pred_fallthru
      _
  $region6: #{tpu_custom_call.1} parent=0 // loop_footer
    %s16 = sadd.s32 1, %s12
  $region7: #{tpu_custom_call.1} parent=0 // loop_footer_branch
    %11 = sbr.rel target = $region3
  $region8: #{tpu_custom_call.1} parent=0 // loop_exit
    _

</llo_original>
